<compile_context>
chip_gen: v7x
topology: tpu7x:2x2x1
jax: 0.10.0
libtpu: 0.0.40
codegen_flags: <defaults>
</compile_context>

<pallas_src>
import functools

import jax
import jax.numpy as jnp
from jax import lax
from jax.experimental import pallas as pl
from jax.experimental.pallas import tpu as pltpu


def _round_up(x, m):
    return (x + m - 1) // m * m


def _embeddings_kernel(
    # scalar-prefetch refs (SMEM)
    word_ids_ref,          # (B * S_pad,) int32, flattened word ids
    pos_start_ref,         # (B * n_seq_tiles,) int32, first position id of each tile
    # inputs
    tt_ids_ref,            # VMEM (1, T, 1) int32   — this tile's token-type ids
    word_hbm,              # ANY/HBM (vocab, H)     — gathered manually
    pos_tab_ref,           # VMEM (P_pad, H)        — resident position table
    tt_tab_ref,            # VMEM (type_vocab, H)   — resident token-type table
    gamma_ref,             # VMEM (1, H)
    beta_ref,              # VMEM (1, H)
    # output
    o_ref,                 # VMEM (1, T, H)
    # scratch
    w_rows,                # VMEM (2, T, H) double-buffered gathered word rows
    sem,                   # DMA semaphores, one per buffer slot
    *, eps, tokens_per_tile, seq_pad, n_seq_tiles,
):
    T = tokens_per_tile
    b = pl.program_id(0)
    s = pl.program_id(1)
    slot = s & 1

    def issue_tile(seq_tile, dst_slot):
        # All SMEM id reads + descriptor pushes happen before any sem wait.
        base = pl.multiple_of(b * seq_pad + seq_tile * T, T)

        def body(r, carry):
            row = word_ids_ref[base + r]
            pltpu.make_async_copy(
                word_hbm.at[row], w_rows.at[dst_slot, r], sem.at[dst_slot]
            ).start()
            return carry

        lax.fori_loop(0, T, body, None, unroll=8)

    # Prime the double buffer at the start of each batch row (slot 0).
    @pl.when(s == 0)
    def _():
        issue_tile(0, 0)

    # Prefetch the next tile of this row into the other slot while the current
    # tile is being normalized (overlaps gather latency with compute + store).
    @pl.when(s + 1 < n_seq_tiles)
    def _():
        nxt = jnp.minimum(s + 1, n_seq_tiles - 1)   # defensive clamp (branch is guarded)
        issue_tile(nxt, 1 - slot)

    # Scalar reads before the wait (sem waits break SMEM store->load forwarding).
    pos_start = pos_start_ref[b * n_seq_tiles + s]

    # Single whole-buffer wait: drains the T row copies of the current slot by
    # total byte count (descriptor shape (T, H) == sum of the T (H,) row copies).
    pltpu.make_async_copy(
        word_hbm.at[pl.ds(0, T)], w_rows.at[slot], sem.at[slot]
    ).wait()

    w = w_rows[slot].astype(jnp.float32)                            # (T, H)

    # Position embedding: contiguous slice of the resident (padded) table.
    p = pos_tab_ref[pl.ds(pos_start, T), :].astype(jnp.float32)     # (T, H)

    # Token-type embedding: tiny resident table, vectorized row select.
    tt = tt_ids_ref[0]                                              # (T, 1) int32
    tt_e = jnp.broadcast_to(tt_tab_ref[0, :].astype(jnp.float32), w.shape)
    for k in range(1, tt_tab_ref.shape[0]):                         # type_vocab_size is small
        tt_e = jnp.where(tt == k, tt_tab_ref[k, :].astype(jnp.float32), tt_e)

    e = w + p + tt_e                                                # (T, H) fp32

    # LayerNorm — biased variance like torch.nn.LayerNorm, computed on centered
    # values; gamma folded into the inverse-stddev factor.
    inv_h = 1.0 / e.shape[-1]
    mean = jnp.sum(e, axis=-1, keepdims=True) * inv_h
    centered = e - mean
    var = jnp.sum(centered * centered, axis=-1, keepdims=True) * inv_h
    inv = lax.rsqrt(var + eps)
    g = gamma_ref[...].astype(jnp.float32)                          # (1, H)
    bb = beta_ref[...].astype(jnp.float32)                          # (1, H)
    o_ref[0] = (centered * (inv * g) + bb).astype(o_ref.dtype)
    # TODO(synk): training-mode dropout (hidden_dropout_prob) not applied; eval-mode identity.


def embeddings_forward(input_ids, word_table, tt_table, pos_table, gamma, beta,
                       token_type_ids=None, position_ids=None,
                       past_key_values_length=0,
                       *, eps=1e-12, tokens_per_tile=256):
    """Forward pass of the Embeddings module.

    Assumes position ids are contiguous (arange-like) within each tile of
    `tokens_per_tile` tokens of a sequence — which is what the module's default
    position_ids buffer produces.
    TODO(synk): arbitrary non-contiguous position_ids would need a row-gather path.
    """
    B, S = input_ids.shape
    H = word_table.shape[1]
    P = pos_table.shape[0]

    if token_type_ids is None:
        token_type_ids = jnp.zeros((B, S), jnp.int32)
    if position_ids is None:
        position_ids = jnp.broadcast_to(
            (past_key_values_length + jnp.arange(S, dtype=jnp.int32))[None, :], (B, S))

    # Sequence tile: multiple of 8 (dense sublanes), capped by the padded seq len.
    # Larger tiles (512-1024) amortize per-step overhead on long sequences; 256
    # keeps >=2 tiles per row for typical S=512 so the gather double-buffer
    # actually overlaps with compute, and fits v7x's 64 MiB VMEM comfortably.
    T = min(_round_up(tokens_per_tile, 8), _round_up(S, 8))
    n_seq_tiles = pl.cdiv(S, T)
    S_pad = n_seq_tiles * T

    def _pad_seq(x):
        x = x.astype(jnp.int32)
        if S_pad != S:
            x = jnp.pad(x, ((0, 0), (0, S_pad - S)))   # pad with id 0 (valid row)
        return x

    word_ids = _pad_seq(input_ids).reshape(B * S_pad)
    tt_ids3d = _pad_seq(token_type_ids).reshape(B, S_pad, 1)
    pos_ids = _pad_seq(position_ids)
    pos_starts = pos_ids.reshape(B, n_seq_tiles, T)[:, :, 0].reshape(B * n_seq_tiles)

    # Pad the position table by T extra rows so a contiguous (T, H) slice
    # starting at any valid position id stays in bounds (pad rows only ever feed
    # padded tokens, which are sliced off below).
    P_pad = _round_up(P + T, 8)
    pos_tab = jnp.pad(pos_table, ((0, P_pad - P), (0, 0)))

    gamma2 = gamma.reshape(1, H)
    beta2 = beta.reshape(1, H)

    kernel = functools.partial(
        _embeddings_kernel, eps=eps, tokens_per_tile=T,
        seq_pad=S_pad, n_seq_tiles=n_seq_tiles)

    out = pl.pallas_call(
        kernel,
        out_shape=jax.ShapeDtypeStruct((B, S_pad, H), jnp.float32),
        grid_spec=pltpu.PrefetchScalarGridSpec(
            num_scalar_prefetch=2,                                    # word ids + tile pos starts -> SMEM
            grid=(B, n_seq_tiles),
            in_specs=[
                pl.BlockSpec((1, T, 1), lambda b, s, *_: (b, s, 0)),  # token-type ids tile
                pl.BlockSpec(memory_space=pl.ANY),                    # word table stays in HBM
                pl.BlockSpec((P_pad, H), lambda b, s, *_: (0, 0)),    # resident position table
                pl.BlockSpec(tt_table.shape, lambda b, s, *_: (0, 0)),# resident token-type table
                pl.BlockSpec((1, H), lambda b, s, *_: (0, 0)),        # gamma
                pl.BlockSpec((1, H), lambda b, s, *_: (0, 0)),        # beta
            ],
            out_specs=pl.BlockSpec((1, T, H), lambda b, s, *_: (b, s, 0)),
            scratch_shapes=[
                pltpu.VMEM((2, T, H), word_table.dtype),  # double-buffered word rows
                pltpu.SemaphoreType.DMA((2,)),            # one DMA sem per buffer slot
            ],
        ),
        compiler_params=pltpu.CompilerParams(
            dimension_semantics=("parallel", "arbitrary"),  # rows independent; tiles carry the buffer
            vmem_limit_bytes=32 * 1024 * 1024,
        ),
    )(word_ids, pos_starts, tt_ids3d, word_table, pos_tab, tt_table, gamma2, beta2)

    if S_pad != S:
        out = out[:, :S, :]
    return out


def _reference(input_ids, token_type_ids, position_ids,
               word_table, tt_table, pos_table, gamma, beta, eps=1e-12):
    e = (word_table[input_ids]
         + tt_table[token_type_ids]
         + pos_table[position_ids]).astype(jnp.float32)
    mean = jnp.mean(e, axis=-1, keepdims=True)
    var = jnp.mean((e - mean) ** 2, axis=-1, keepdims=True)
    return (e - mean) * lax.rsqrt(var + eps) * gamma + beta


if __name__ == "__main__":
    # Small, module-consistent config.
    vocab_size = 32
    hidden_size = 128
    max_position_embeddings = 16
    type_vocab_size = 2
    pad_token_id = 0
    layer_norm_eps = 1e-12
    B, S = 2, 8

    key = jax.random.PRNGKey(0)
    k_w, k_t, k_p, k_ids = jax.random.split(key, 4)

    # nn.Embedding default init: N(0, 1); padding_idx row zeroed.
    word_table = jax.random.normal(k_w, (vocab_size, hidden_size), jnp.float32)
    word_table = word_table.at[pad_token_id].set(0.0)
    tt_table = jax.random.normal(k_t, (type_vocab_size, hidden_size), jnp.float32)
    pos_table = jax.random.normal(k_p, (max_position_embeddings, hidden_size), jnp.float32)
    # nn.LayerNorm default init: weight=1, bias=0.
    gamma = jnp.ones((hidden_size,), jnp.float32)
    beta = jnp.zeros((hidden_size,), jnp.float32)

    input_ids = jax.random.randint(k_ids, (B, S), 0, vocab_size, dtype=jnp.int32)
    # Defaults from the module's forward: token_type_ids = zeros, position_ids = arange.
    token_type_ids = jnp.zeros((B, S), jnp.int32)
    position_ids = jnp.broadcast_to(jnp.arange(S, dtype=jnp.int32)[None, :], (B, S))

    out = embeddings_forward(input_ids, word_table, tt_table, pos_table, gamma, beta,
                             token_type_ids=token_type_ids, position_ids=position_ids,
                             eps=layer_norm_eps)
    out = jax.block_until_ready(out)

    ref = _reference(input_ids, token_type_ids, position_ids,
                     word_table, tt_table, pos_table, gamma, beta, layer_norm_eps)

    assert out.shape == (B, S, hidden_size)
    assert jnp.allclose(out, ref, atol=1e-4, rtol=1e-4), "mismatch vs reference"
    print("KERNEL_OK")
</pallas_src>

<mosaic_0001>
module attributes {stable_mosaic.version = 11 : i64} {
  func.func @_embeddings_kernel(%arg0: i32, %arg1: i32, %arg2: memref<16xi32, #tpu.memory_space<smem>>, %arg3: memref<2xi32, #tpu.memory_space<smem>>, %arg4: memref<1x8x1xi32, #tpu.memory_space<vmem>>, %arg5: memref<32x128xf32, #tpu.memory_space<any>>, %arg6: memref<24x128xf32, #tpu.memory_space<vmem>>, %arg7: memref<2x128xf32, #tpu.memory_space<vmem>>, %arg8: memref<1x128xf32, #tpu.memory_space<vmem>>, %arg9: memref<1x128xf32, #tpu.memory_space<vmem>>, %arg10: memref<1x8x128xf32, #tpu.memory_space<vmem>>, %arg11: memref<2x8x128xf32, #tpu.memory_space<vmem>>, %arg12: memref<2x!tpu.dma_semaphore, #tpu.memory_space<semaphore_mem>>) attributes {dimension_semantics = [#tpu.dimension_semantics<parallel>, #tpu.dimension_semantics<arbitrary>], iteration_bounds = array<i64: 2, 1>, scalar_prefetch = 2 : i64, scratch_operands = 2 : i64, tpu.core_type = #tpu.core_type<tc>, window_params = [{transform_indices = @transform_0, window_bounds = array<i64: 1, 8, 1>}, {}, {pipeline_mode = #tpu.pipeline_mode<synchronous>, transform_indices = @transform_2, window_bounds = array<i64: 24, 128>}, {pipeline_mode = #tpu.pipeline_mode<synchronous>, transform_indices = @transform_3, window_bounds = array<i64: 2, 128>}, {pipeline_mode = #tpu.pipeline_mode<synchronous>, transform_indices = @transform_4, window_bounds = array<i64: 1, 128>}, {pipeline_mode = #tpu.pipeline_mode<synchronous>, transform_indices = @transform_5, window_bounds = array<i64: 1, 128>}, {transform_indices = @transform_6, window_bounds = array<i64: 1, 8, 128>}]} {
    %c1_i32 = arith.constant 1 : i32
    %0 = arith.andi %arg1, %c1_i32 : i32
    %c0_i32 = arith.constant 0 : i32
    %1 = arith.cmpi eq, %arg1, %c0_i32 : i32
    %2 = arith.extui %1 : i1 to i32
    %c0_i32_0 = arith.constant 0 : i32
    %3 = arith.cmpi ne, %2, %c0_i32_0 : i32
    scf.if %3 {
      %c8_i32 = arith.constant 8 : i32
      %64 = arith.muli %arg0, %c8_i32 : i32
      %c0_i32_29 = arith.constant 0 : i32
      %65 = arith.addi %64, %c0_i32_29 : i32
      %66 = tpu.assume_multiple %65, 8 : i32
      %c0_i32_30 = arith.constant 0 : i32
      %67 = arith.addi %66, %c0_i32_30 : i32
      %68 = arith.index_cast %67 : i32 to index
      %69 = memref.load %arg2[%68] : memref<16xi32, #tpu.memory_space<smem>>
      %c0_i32_31 = arith.constant 0 : i32
      %c0_i32_32 = arith.constant 0 : i32
      %c0_i32_33 = arith.constant 0 : i32
      %70 = tpu.memref_slice %arg5[%69, %c0_i32_33] : memref<32x128xf32, #tpu.memory_space<any>> -> memref<1x128xf32, #tpu.memory_space<any>>
      %71 = tpu.memref_squeeze %70 : memref<1x128xf32, #tpu.memory_space<any>> -> memref<128xf32, #tpu.memory_space<any>>
      %c0_i32_34 = arith.constant 0 : i32
      %72 = tpu.memref_slice %arg11[%c0_i32_31, %c0_i32_30, %c0_i32_34] : memref<2x8x128xf32, #tpu.memory_space<vmem>> -> memref<1x1x128xf32, #tpu.memory_space<vmem>>
      %73 = tpu.memref_squeeze %72 : memref<1x1x128xf32, #tpu.memory_space<vmem>> -> memref<128xf32, #tpu.memory_space<vmem>>
      %74 = tpu.memref_slice %arg12[%c0_i32_32] : memref<2x!tpu.dma_semaphore, #tpu.memory_space<semaphore_mem>> -> memref<1x!tpu.dma_semaphore, #tpu.memory_space<semaphore_mem>>
      %75 = tpu.memref_squeeze %74 : memref<1x!tpu.dma_semaphore, #tpu.memory_space<semaphore_mem>> -> memref<!tpu.dma_semaphore, #tpu.memory_space<semaphore_mem>>
      tpu.enqueue_dma source(%71 : memref<128xf32, #tpu.memory_space<any>>) target(%73 : memref<128xf32, #tpu.memory_space<vmem>>) target_semaphore(%75 : memref<!tpu.dma_semaphore, #tpu.memory_space<semaphore_mem>>)
      %c1_i32_35 = arith.constant 1 : i32
      %76 = arith.addi %66, %c1_i32_35 : i32
      %77 = arith.index_cast %76 : i32 to index
      %78 = memref.load %arg2[%77] : memref<16xi32, #tpu.memory_space<smem>>
      %c0_i32_36 = arith.constant 0 : i32
      %c0_i32_37 = arith.constant 0 : i32
      %c0_i32_38 = arith.constant 0 : i32
      %79 = tpu.memref_slice %arg5[%78, %c0_i32_38] : memref<32x128xf32, #tpu.memory_space<any>> -> memref<1x128xf32, #tpu.memory_space<any>>
      %80 = tpu.memref_squeeze %79 : memref<1x128xf32, #tpu.memory_space<any>> -> memref<128xf32, #tpu.memory_space<any>>
      %c0_i32_39 = arith.constant 0 : i32
      %81 = tpu.memref_slice %arg11[%c0_i32_36, %c1_i32_35, %c0_i32_39] : memref<2x8x128xf32, #tpu.memory_space<vmem>> -> memref<1x1x128xf32, #tpu.memory_space<vmem>>
      %82 = tpu.memref_squeeze %81 : memref<1x1x128xf32, #tpu.memory_space<vmem>> -> memref<128xf32, #tpu.memory_space<vmem>>
      %83 = tpu.memref_slice %arg12[%c0_i32_37] : memref<2x!tpu.dma_semaphore, #tpu.memory_space<semaphore_mem>> -> memref<1x!tpu.dma_semaphore, #tpu.memory_space<semaphore_mem>>
      %84 = tpu.memref_squeeze %83 : memref<1x!tpu.dma_semaphore, #tpu.memory_space<semaphore_mem>> -> memref<!tpu.dma_semaphore, #tpu.memory_space<semaphore_mem>>
      tpu.enqueue_dma source(%80 : memref<128xf32, #tpu.memory_space<any>>) target(%82 : memref<128xf32, #tpu.memory_space<vmem>>) target_semaphore(%84 : memref<!tpu.dma_semaphore, #tpu.memory_space<semaphore_mem>>)
      %c2_i32 = arith.constant 2 : i32
      %85 = arith.addi %66, %c2_i32 : i32
      %86 = arith.index_cast %85 : i32 to index
      %87 = memref.load %arg2[%86] : memref<16xi32, #tpu.memory_space<smem>>
      %c0_i32_40 = arith.constant 0 : i32
      %c0_i32_41 = arith.constant 0 : i32
      %c0_i32_42 = arith.constant 0 : i32
      %88 = tpu.memref_slice %arg5[%87, %c0_i32_42] : memref<32x128xf32, #tpu.memory_space<any>> -> memref<1x128xf32, #tpu.memory_space<any>>
      %89 = tpu.memref_squeeze %88 : memref<1x128xf32, #tpu.memory_space<any>> -> memref<128xf32, #tpu.memory_space<any>>
      %c0_i32_43 = arith.constant 0 : i32
      %90 = tpu.memref_slice %arg11[%c0_i32_40, %c2_i32, %c0_i32_43] : memref<2x8x128xf32, #tpu.memory_space<vmem>> -> memref<1x1x128xf32, #tpu.memory_space<vmem>>
      %91 = tpu.memref_squeeze %90 : memref<1x1x128xf32, #tpu.memory_space<vmem>> -> memref<128xf32, #tpu.memory_space<vmem>>
      %92 = tpu.memref_slice %arg12[%c0_i32_41] : memref<2x!tpu.dma_semaphore, #tpu.memory_space<semaphore_mem>> -> memref<1x!tpu.dma_semaphore, #tpu.memory_space<semaphore_mem>>
      %93 = tpu.memref_squeeze %92 : memref<1x!tpu.dma_semaphore, #tpu.memory_space<semaphore_mem>> -> memref<!tpu.dma_semaphore, #tpu.memory_space<semaphore_mem>>
      tpu.enqueue_dma source(%89 : memref<128xf32, #tpu.memory_space<any>>) target(%91 : memref<128xf32, #tpu.memory_space<vmem>>) target_semaphore(%93 : memref<!tpu.dma_semaphore, #tpu.memory_space<semaphore_mem>>)
      %c3_i32 = arith.constant 3 : i32
      %94 = arith.addi %66, %c3_i32 : i32
      %95 = arith.index_cast %94 : i32 to index
      %96 = memref.load %arg2[%95] : memref<16xi32, #tpu.memory_space<smem>>
      %c0_i32_44 = arith.constant 0 : i32
      %c0_i32_45 = arith.constant 0 : i32
      %c0_i32_46 = arith.constant 0 : i32
      %97 = tpu.memref_slice %arg5[%96, %c0_i32_46] : memref<32x128xf32, #tpu.memory_space<any>> -> memref<1x128xf32, #tpu.memory_space<any>>
      %98 = tpu.memref_squeeze %97 : memref<1x128xf32, #tpu.memory_space<any>> -> memref<128xf32, #tpu.memory_space<any>>
      %c0_i32_47 = arith.constant 0 : i32
      %99 = tpu.memref_slice %arg11[%c0_i32_44, %c3_i32, %c0_i32_47] : memref<2x8x128xf32, #tpu.memory_space<vmem>> -> memref<1x1x128xf32, #tpu.memory_space<vmem>>
      %100 = tpu.memref_squeeze %99 : memref<1x1x128xf32, #tpu.memory_space<vmem>> -> memref<128xf32, #tpu.memory_space<vmem>>
      %101 = tpu.memref_slice %arg12[%c0_i32_45] : memref<2x!tpu.dma_semaphore, #tpu.memory_space<semaphore_mem>> -> memref<1x!tpu.dma_semaphore, #tpu.memory_space<semaphore_mem>>
      %102 = tpu.memref_squeeze %101 : memref<1x!tpu.dma_semaphore, #tpu.memory_space<semaphore_mem>> -> memref<!tpu.dma_semaphore, #tpu.memory_space<semaphore_mem>>
      tpu.enqueue_dma source(%98 : memref<128xf32, #tpu.memory_space<any>>) target(%100 : memref<128xf32, #tpu.memory_space<vmem>>) target_semaphore(%102 : memref<!tpu.dma_semaphore, #tpu.memory_space<semaphore_mem>>)
      %c4_i32 = arith.constant 4 : i32
      %103 = arith.addi %66, %c4_i32 : i32
      %104 = arith.index_cast %103 : i32 to index
      %105 = memref.load %arg2[%104] : memref<16xi32, #tpu.memory_space<smem>>
      %c0_i32_48 = arith.constant 0 : i32
      %c0_i32_49 = arith.constant 0 : i32
      %c0_i32_50 = arith.constant 0 : i32
      %106 = tpu.memref_slice %arg5[%105, %c0_i32_50] : memref<32x128xf32, #tpu.memory_space<any>> -> memref<1x128xf32, #tpu.memory_space<any>>
      %107 = tpu.memref_squeeze %106 : memref<1x128xf32, #tpu.memory_space<any>> -> memref<128xf32, #tpu.memory_space<any>>
      %c0_i32_51 = arith.constant 0 : i32
      %108 = tpu.memref_slice %arg11[%c0_i32_48, %c4_i32, %c0_i32_51] : memref<2x8x128xf32, #tpu.memory_space<vmem>> -> memref<1x1x128xf32, #tpu.memory_space<vmem>>
      %109 = tpu.memref_squeeze %108 : memref<1x1x128xf32, #tpu.memory_space<vmem>> -> memref<128xf32, #tpu.memory_space<vmem>>
      %110 = tpu.memref_slice %arg12[%c0_i32_49] : memref<2x!tpu.dma_semaphore, #tpu.memory_space<semaphore_mem>> -> memref<1x!tpu.dma_semaphore, #tpu.memory_space<semaphore_mem>>
      %111 = tpu.memref_squeeze %110 : memref<1x!tpu.dma_semaphore, #tpu.memory_space<semaphore_mem>> -> memref<!tpu.dma_semaphore, #tpu.memory_space<semaphore_mem>>
      tpu.enqueue_dma source(%107 : memref<128xf32, #tpu.memory_space<any>>) target(%109 : memref<128xf32, #tpu.memory_space<vmem>>) target_semaphore(%111 : memref<!tpu.dma_semaphore, #tpu.memory_space<semaphore_mem>>)
      %c5_i32 = arith.constant 5 : i32
      %112 = arith.addi %66, %c5_i32 : i32
      %113 = arith.index_cast %112 : i32 to index
      %114 = memref.load %arg2[%113] : memref<16xi32, #tpu.memory_space<smem>>
      %c0_i32_52 = arith.constant 0 : i32
      %c0_i32_53 = arith.constant 0 : i32
      %c0_i32_54 = arith.constant 0 : i32
      %115 = tpu.memref_slice %arg5[%114, %c0_i32_54] : memref<32x128xf32, #tpu.memory_space<any>> -> memref<1x128xf32, #tpu.memory_space<any>>
      %116 = tpu.memref_squeeze %115 : memref<1x128xf32, #tpu.memory_space<any>> -> memref<128xf32, #tpu.memory_space<any>>
      %c0_i32_55 = arith.constant 0 : i32
      %117 = tpu.memref_slice %arg11[%c0_i32_52, %c5_i32, %c0_i32_55] : memref<2x8x128xf32, #tpu.memory_space<vmem>> -> memref<1x1x128xf32, #tpu.memory_space<vmem>>
      %118 = tpu.memref_squeeze %117 : memref<1x1x128xf32, #tpu.memory_space<vmem>> -> memref<128xf32, #tpu.memory_space<vmem>>
      %119 = tpu.memref_slice %arg12[%c0_i32_53] : memref<2x!tpu.dma_semaphore, #tpu.memory_space<semaphore_mem>> -> memref<1x!tpu.dma_semaphore, #tpu.memory_space<semaphore_mem>>
      %120 = tpu.memref_squeeze %119 : memref<1x!tpu.dma_semaphore, #tpu.memory_space<semaphore_mem>> -> memref<!tpu.dma_semaphore, #tpu.memory_space<semaphore_mem>>
      tpu.enqueue_dma source(%116 : memref<128xf32, #tpu.memory_space<any>>) target(%118 : memref<128xf32, #tpu.memory_space<vmem>>) target_semaphore(%120 : memref<!tpu.dma_semaphore, #tpu.memory_space<semaphore_mem>>)
      %c6_i32 = arith.constant 6 : i32
      %121 = arith.addi %66, %c6_i32 : i32
      %122 = arith.index_cast %121 : i32 to index
      %123 = memref.load %arg2[%122] : memref<16xi32, #tpu.memory_space<smem>>
      %c0_i32_56 = arith.constant 0 : i32
      %c0_i32_57 = arith.constant 0 : i32
      %c0_i32_58 = arith.constant 0 : i32
      %124 = tpu.memref_slice %arg5[%123, %c0_i32_58] : memref<32x128xf32, #tpu.memory_space<any>> -> memref<1x128xf32, #tpu.memory_space<any>>
      %125 = tpu.memref_squeeze %124 : memref<1x128xf32, #tpu.memory_space<any>> -> memref<128xf32, #tpu.memory_space<any>>
      %c0_i32_59 = arith.constant 0 : i32
      %126 = tpu.memref_slice %arg11[%c0_i32_56, %c6_i32, %c0_i32_59] : memref<2x8x128xf32, #tpu.memory_space<vmem>> -> memref<1x1x128xf32, #tpu.memory_space<vmem>>
      %127 = tpu.memref_squeeze %126 : memref<1x1x128xf32, #tpu.memory_space<vmem>> -> memref<128xf32, #tpu.memory_space<vmem>>
      %128 = tpu.memref_slice %arg12[%c0_i32_57] : memref<2x!tpu.dma_semaphore, #tpu.memory_space<semaphore_mem>> -> memref<1x!tpu.dma_semaphore, #tpu.memory_space<semaphore_mem>>
      %129 = tpu.memref_squeeze %128 : memref<1x!tpu.dma_semaphore, #tpu.memory_space<semaphore_mem>> -> memref<!tpu.dma_semaphore, #tpu.memory_space<semaphore_mem>>
      tpu.enqueue_dma source(%125 : memref<128xf32, #tpu.memory_space<any>>) target(%127 : memref<128xf32, #tpu.memory_space<vmem>>) target_semaphore(%129 : memref<!tpu.dma_semaphore, #tpu.memory_space<semaphore_mem>>)
      %c7_i32 = arith.constant 7 : i32
      %130 = arith.addi %66, %c7_i32 : i32
      %131 = arith.index_cast %130 : i32 to index
      %132 = memref.load %arg2[%131] : memref<16xi32, #tpu.memory_space<smem>>
      %c0_i32_60 = arith.constant 0 : i32
      %c0_i32_61 = arith.constant 0 : i32
      %c0_i32_62 = arith.constant 0 : i32
      %133 = tpu.memref_slice %arg5[%132, %c0_i32_62] : memref<32x128xf32, #tpu.memory_space<any>> -> memref<1x128xf32, #tpu.memory_space<any>>
      %134 = tpu.memref_squeeze %133 : memref<1x128xf32, #tpu.memory_space<any>> -> memref<128xf32, #tpu.memory_space<any>>
      %c0_i32_63 = arith.constant 0 : i32
      %135 = tpu.memref_slice %arg11[%c0_i32_60, %c7_i32, %c0_i32_63] : memref<2x8x128xf32, #tpu.memory_space<vmem>> -> memref<1x1x128xf32, #tpu.memory_space<vmem>>
      %136 = tpu.memref_squeeze %135 : memref<1x1x128xf32, #tpu.memory_space<vmem>> -> memref<128xf32, #tpu.memory_space<vmem>>
      %137 = tpu.memref_slice %arg12[%c0_i32_61] : memref<2x!tpu.dma_semaphore, #tpu.memory_space<semaphore_mem>> -> memref<1x!tpu.dma_semaphore, #tpu.memory_space<semaphore_mem>>
      %138 = tpu.memref_squeeze %137 : memref<1x!tpu.dma_semaphore, #tpu.memory_space<semaphore_mem>> -> memref<!tpu.dma_semaphore, #tpu.memory_space<semaphore_mem>>
      tpu.enqueue_dma source(%134 : memref<128xf32, #tpu.memory_space<any>>) target(%136 : memref<128xf32, #tpu.memory_space<vmem>>) target_semaphore(%138 : memref<!tpu.dma_semaphore, #tpu.memory_space<semaphore_mem>>)
      %c8_i32_64 = arith.constant 8 : i32
    } else {
    }
    %c1_i32_1 = arith.constant 1 : i32
    %4 = arith.addi %arg1, %c1_i32_1 : i32
    %c1_i32_2 = arith.constant 1 : i32
    %5 = arith.cmpi slt, %4, %c1_i32_2 : i32
    %6 = arith.extui %5 : i1 to i32
    %c0_i32_3 = arith.constant 0 : i32
    %7 = arith.cmpi ne, %6, %c0_i32_3 : i32
    scf.if %7 {
      %c1_i32_29 = arith.constant 1 : i32
      %64 = arith.addi %arg1, %c1_i32_29 : i32
      %c0_i32_30 = arith.constant 0 : i32
      %65 = arith.minsi %64, %c0_i32_30 : i32
      %c1_i32_31 = arith.constant 1 : i32
      %66 = arith.subi %c1_i32_31, %0 : i32
      %c8_i32 = arith.constant 8 : i32
      %67 = arith.muli %arg0, %c8_i32 : i32
      %c8_i32_32 = arith.constant 8 : i32
      %68 = arith.muli %65, %c8_i32_32 : i32
      %69 = arith.addi %67, %68 : i32
      %70 = tpu.assume_multiple %69, 8 : i32
      %c0_i32_33 = arith.constant 0 : i32
      %71 = arith.addi %70, %c0_i32_33 : i32
      %72 = arith.index_cast %71 : i32 to index
      %73 = memref.load %arg2[%72] : memref<16xi32, #tpu.memory_space<smem>>
      %c0_i32_34 = arith.constant 0 : i32
      %74 = tpu.memref_slice %arg5[%73, %c0_i32_34] : memref<32x128xf32, #tpu.memory_space<any>> -> memref<1x128xf32, #tpu.memory_space<any>>
      %75 = tpu.memref_squeeze %74 : memref<1x128xf32, #tpu.memory_space<any>> -> memref<128xf32, #tpu.memory_space<any>>
      %c0_i32_35 = arith.constant 0 : i32
      %76 = tpu.memref_slice %arg11[%66, %c0_i32_33, %c0_i32_35] : memref<2x8x128xf32, #tpu.memory_space<vmem>> -> memref<1x1x128xf32, #tpu.memory_space<vmem>>
      %77 = tpu.memref_squeeze %76 : memref<1x1x128xf32, #tpu.memory_space<vmem>> -> memref<128xf32, #tpu.memory_space<vmem>>
      %78 = tpu.memref_slice %arg12[%66] : memref<2x!tpu.dma_semaphore, #tpu.memory_space<semaphore_mem>> -> memref<1x!tpu.dma_semaphore, #tpu.memory_space<semaphore_mem>>
      %79 = tpu.memref_squeeze %78 : memref<1x!tpu.dma_semaphore, #tpu.memory_space<semaphore_mem>> -> memref<!tpu.dma_semaphore, #tpu.memory_space<semaphore_mem>>
      tpu.enqueue_dma source(%75 : memref<128xf32, #tpu.memory_space<any>>) target(%77 : memref<128xf32, #tpu.memory_space<vmem>>) target_semaphore(%79 : memref<!tpu.dma_semaphore, #tpu.memory_space<semaphore_mem>>)
      %c1_i32_36 = arith.constant 1 : i32
      %80 = arith.addi %70, %c1_i32_36 : i32
      %81 = arith.index_cast %80 : i32 to index
      %82 = memref.load %arg2[%81] : memref<16xi32, #tpu.memory_space<smem>>
      %c0_i32_37 = arith.constant 0 : i32
      %83 = tpu.memref_slice %arg5[%82, %c0_i32_37] : memref<32x128xf32, #tpu.memory_space<any>> -> memref<1x128xf32, #tpu.memory_space<any>>
      %84 = tpu.memref_squeeze %83 : memref<1x128xf32, #tpu.memory_space<any>> -> memref<128xf32, #tpu.memory_space<any>>
      %c0_i32_38 = arith.constant 0 : i32
      %85 = tpu.memref_slice %arg11[%66, %c1_i32_36, %c0_i32_38] : memref<2x8x128xf32, #tpu.memory_space<vmem>> -> memref<1x1x128xf32, #tpu.memory_space<vmem>>
      %86 = tpu.memref_squeeze %85 : memref<1x1x128xf32, #tpu.memory_space<vmem>> -> memref<128xf32, #tpu.memory_space<vmem>>
      %87 = tpu.memref_slice %arg12[%66] : memref<2x!tpu.dma_semaphore, #tpu.memory_space<semaphore_mem>> -> memref<1x!tpu.dma_semaphore, #tpu.memory_space<semaphore_mem>>
      %88 = tpu.memref_squeeze %87 : memref<1x!tpu.dma_semaphore, #tpu.memory_space<semaphore_mem>> -> memref<!tpu.dma_semaphore, #tpu.memory_space<semaphore_mem>>
      tpu.enqueue_dma source(%84 : memref<128xf32, #tpu.memory_space<any>>) target(%86 : memref<128xf32, #tpu.memory_space<vmem>>) target_semaphore(%88 : memref<!tpu.dma_semaphore, #tpu.memory_space<semaphore_mem>>)
      %c2_i32 = arith.constant 2 : i32
      %89 = arith.addi %70, %c2_i32 : i32
      %90 = arith.index_cast %89 : i32 to index
      %91 = memref.load %arg2[%90] : memref<16xi32, #tpu.memory_space<smem>>
      %c0_i32_39 = arith.constant 0 : i32
      %92 = tpu.memref_slice %arg5[%91, %c0_i32_39] : memref<32x128xf32, #tpu.memory_space<any>> -> memref<1x128xf32, #tpu.memory_space<any>>
      %93 = tpu.memref_squeeze %92 : memref<1x128xf32, #tpu.memory_space<any>> -> memref<128xf32, #tpu.memory_space<any>>
      %c0_i32_40 = arith.constant 0 : i32
      %94 = tpu.memref_slice %arg11[%66, %c2_i32, %c0_i32_40] : memref<2x8x128xf32, #tpu.memory_space<vmem>> -> memref<1x1x128xf32, #tpu.memory_space<vmem>>
      %95 = tpu.memref_squeeze %94 : memref<1x1x128xf32, #tpu.memory_space<vmem>> -> memref<128xf32, #tpu.memory_space<vmem>>
      %96 = tpu.memref_slice %arg12[%66] : memref<2x!tpu.dma_semaphore, #tpu.memory_space<semaphore_mem>> -> memref<1x!tpu.dma_semaphore, #tpu.memory_space<semaphore_mem>>
      %97 = tpu.memref_squeeze %96 : memref<1x!tpu.dma_semaphore, #tpu.memory_space<semaphore_mem>> -> memref<!tpu.dma_semaphore, #tpu.memory_space<semaphore_mem>>
      tpu.enqueue_dma source(%93 : memref<128xf32, #tpu.memory_space<any>>) target(%95 : memref<128xf32, #tpu.memory_space<vmem>>) target_semaphore(%97 : memref<!tpu.dma_semaphore, #tpu.memory_space<semaphore_mem>>)
      %c3_i32 = arith.constant 3 : i32
      %98 = arith.addi %70, %c3_i32 : i32
      %99 = arith.index_cast %98 : i32 to index
      %100 = memref.load %arg2[%99] : memref<16xi32, #tpu.memory_space<smem>>
      %c0_i32_41 = arith.constant 0 : i32
      %101 = tpu.memref_slice %arg5[%100, %c0_i32_41] : memref<32x128xf32, #tpu.memory_space<any>> -> memref<1x128xf32, #tpu.memory_space<any>>
      %102 = tpu.memref_squeeze %101 : memref<1x128xf32, #tpu.memory_space<any>> -> memref<128xf32, #tpu.memory_space<any>>
      %c0_i32_42 = arith.constant 0 : i32
      %103 = tpu.memref_slice %arg11[%66, %c3_i32, %c0_i32_42] : memref<2x8x128xf32, #tpu.memory_space<vmem>> -> memref<1x1x128xf32, #tpu.memory_space<vmem>>
      %104 = tpu.memref_squeeze %103 : memref<1x1x128xf32, #tpu.memory_space<vmem>> -> memref<128xf32, #tpu.memory_space<vmem>>
      %105 = tpu.memref_slice %arg12[%66] : memref<2x!tpu.dma_semaphore, #tpu.memory_space<semaphore_mem>> -> memref<1x!tpu.dma_semaphore, #tpu.memory_space<semaphore_mem>>
      %106 = tpu.memref_squeeze %105 : memref<1x!tpu.dma_semaphore, #tpu.memory_space<semaphore_mem>> -> memref<!tpu.dma_semaphore, #tpu.memory_space<semaphore_mem>>
      tpu.enqueue_dma source(%102 : memref<128xf32, #tpu.memory_space<any>>) target(%104 : memref<128xf32, #tpu.memory_space<vmem>>) target_semaphore(%106 : memref<!tpu.dma_semaphore, #tpu.memory_space<semaphore_mem>>)
      %c4_i32 = arith.constant 4 : i32
      %107 = arith.addi %70, %c4_i32 : i32
      %108 = arith.index_cast %107 : i32 to index
      %109 = memref.load %arg2[%108] : memref<16xi32, #tpu.memory_space<smem>>
      %c0_i32_43 = arith.constant 0 : i32
      %110 = tpu.memref_slice %arg5[%109, %c0_i32_43] : memref<32x128xf32, #tpu.memory_space<any>> -> memref<1x128xf32, #tpu.memory_space<any>>
      %111 = tpu.memref_squeeze %110 : memref<1x128xf32, #tpu.memory_space<any>> -> memref<128xf32, #tpu.memory_space<any>>
      %c0_i32_44 = arith.constant 0 : i32
      %112 = tpu.memref_slice %arg11[%66, %c4_i32, %c0_i32_44] : memref<2x8x128xf32, #tpu.memory_space<vmem>> -> memref<1x1x128xf32, #tpu.memory_space<vmem>>
      %113 = tpu.memref_squeeze %112 : memref<1x1x128xf32, #tpu.memory_space<vmem>> -> memref<128xf32, #tpu.memory_space<vmem>>
      %114 = tpu.memref_slice %arg12[%66] : memref<2x!tpu.dma_semaphore, #tpu.memory_space<semaphore_mem>> -> memref<1x!tpu.dma_semaphore, #tpu.memory_space<semaphore_mem>>
      %115 = tpu.memref_squeeze %114 : memref<1x!tpu.dma_semaphore, #tpu.memory_space<semaphore_mem>> -> memref<!tpu.dma_semaphore, #tpu.memory_space<semaphore_mem>>
      tpu.enqueue_dma source(%111 : memref<128xf32, #tpu.memory_space<any>>) target(%113 : memref<128xf32, #tpu.memory_space<vmem>>) target_semaphore(%115 : memref<!tpu.dma_semaphore, #tpu.memory_space<semaphore_mem>>)
      %c5_i32 = arith.constant 5 : i32
      %116 = arith.addi %70, %c5_i32 : i32
      %117 = arith.index_cast %116 : i32 to index
      %118 = memref.load %arg2[%117] : memref<16xi32, #tpu.memory_space<smem>>
      %c0_i32_45 = arith.constant 0 : i32
      %119 = tpu.memref_slice %arg5[%118, %c0_i32_45] : memref<32x128xf32, #tpu.memory_space<any>> -> memref<1x128xf32, #tpu.memory_space<any>>
      %120 = tpu.memref_squeeze %119 : memref<1x128xf32, #tpu.memory_space<any>> -> memref<128xf32, #tpu.memory_space<any>>
      %c0_i32_46 = arith.constant 0 : i32
      %121 = tpu.memref_slice %arg11[%66, %c5_i32, %c0_i32_46] : memref<2x8x128xf32, #tpu.memory_space<vmem>> -> memref<1x1x128xf32, #tpu.memory_space<vmem>>
      %122 = tpu.memref_squeeze %121 : memref<1x1x128xf32, #tpu.memory_space<vmem>> -> memref<128xf32, #tpu.memory_space<vmem>>
      %123 = tpu.memref_slice %arg12[%66] : memref<2x!tpu.dma_semaphore, #tpu.memory_space<semaphore_mem>> -> memref<1x!tpu.dma_semaphore, #tpu.memory_space<semaphore_mem>>
      %124 = tpu.memref_squeeze %123 : memref<1x!tpu.dma_semaphore, #tpu.memory_space<semaphore_mem>> -> memref<!tpu.dma_semaphore, #tpu.memory_space<semaphore_mem>>
      tpu.enqueue_dma source(%120 : memref<128xf32, #tpu.memory_space<any>>) target(%122 : memref<128xf32, #tpu.memory_space<vmem>>) target_semaphore(%124 : memref<!tpu.dma_semaphore, #tpu.memory_space<semaphore_mem>>)
      %c6_i32 = arith.constant 6 : i32
      %125 = arith.addi %70, %c6_i32 : i32
      %126 = arith.index_cast %125 : i32 to index
      %127 = memref.load %arg2[%126] : memref<16xi32, #tpu.memory_space<smem>>
      %c0_i32_47 = arith.constant 0 : i32
      %128 = tpu.memref_slice %arg5[%127, %c0_i32_47] : memref<32x128xf32, #tpu.memory_space<any>> -> memref<1x128xf32, #tpu.memory_space<any>>
      %129 = tpu.memref_squeeze %128 : memref<1x128xf32, #tpu.memory_space<any>> -> memref<128xf32, #tpu.memory_space<any>>
      %c0_i32_48 = arith.constant 0 : i32
      %130 = tpu.memref_slice %arg11[%66, %c6_i32, %c0_i32_48] : memref<2x8x128xf32, #tpu.memory_space<vmem>> -> memref<1x1x128xf32, #tpu.memory_space<vmem>>
      %131 = tpu.memref_squeeze %130 : memref<1x1x128xf32, #tpu.memory_space<vmem>> -> memref<128xf32, #tpu.memory_space<vmem>>
      %132 = tpu.memref_slice %arg12[%66] : memref<2x!tpu.dma_semaphore, #tpu.memory_space<semaphore_mem>> -> memref<1x!tpu.dma_semaphore, #tpu.memory_space<semaphore_mem>>
      %133 = tpu.memref_squeeze %132 : memref<1x!tpu.dma_semaphore, #tpu.memory_space<semaphore_mem>> -> memref<!tpu.dma_semaphore, #tpu.memory_space<semaphore_mem>>
      tpu.enqueue_dma source(%129 : memref<128xf32, #tpu.memory_space<any>>) target(%131 : memref<128xf32, #tpu.memory_space<vmem>>) target_semaphore(%133 : memref<!tpu.dma_semaphore, #tpu.memory_space<semaphore_mem>>)
      %c7_i32 = arith.constant 7 : i32
      %134 = arith.addi %70, %c7_i32 : i32
      %135 = arith.index_cast %134 : i32 to index
      %136 = memref.load %arg2[%135] : memref<16xi32, #tpu.memory_space<smem>>
      %c0_i32_49 = arith.constant 0 : i32
      %137 = tpu.memref_slice %arg5[%136, %c0_i32_49] : memref<32x128xf32, #tpu.memory_space<any>> -> memref<1x128xf32, #tpu.memory_space<any>>
      %138 = tpu.memref_squeeze %137 : memref<1x128xf32, #tpu.memory_space<any>> -> memref<128xf32, #tpu.memory_space<any>>
      %c0_i32_50 = arith.constant 0 : i32
      %139 = tpu.memref_slice %arg11[%66, %c7_i32, %c0_i32_50] : memref<2x8x128xf32, #tpu.memory_space<vmem>> -> memref<1x1x128xf32, #tpu.memory_space<vmem>>
      %140 = tpu.memref_squeeze %139 : memref<1x1x128xf32, #tpu.memory_space<vmem>> -> memref<128xf32, #tpu.memory_space<vmem>>
      %141 = tpu.memref_slice %arg12[%66] : memref<2x!tpu.dma_semaphore, #tpu.memory_space<semaphore_mem>> -> memref<1x!tpu.dma_semaphore, #tpu.memory_space<semaphore_mem>>
      %142 = tpu.memref_squeeze %141 : memref<1x!tpu.dma_semaphore, #tpu.memory_space<semaphore_mem>> -> memref<!tpu.dma_semaphore, #tpu.memory_space<semaphore_mem>>
      tpu.enqueue_dma source(%138 : memref<128xf32, #tpu.memory_space<any>>) target(%140 : memref<128xf32, #tpu.memory_space<vmem>>) target_semaphore(%142 : memref<!tpu.dma_semaphore, #tpu.memory_space<semaphore_mem>>)
      %c8_i32_51 = arith.constant 8 : i32
    } else {
    }
    %c1_i32_4 = arith.constant 1 : i32
    %8 = arith.muli %arg0, %c1_i32_4 : i32
    %9 = arith.addi %8, %arg1 : i32
    %10 = arith.index_cast %9 : i32 to index
    %11 = memref.load %arg3[%10] : memref<2xi32, #tpu.memory_space<smem>>
    %c0_i32_5 = arith.constant 0 : i32
    %c0_i32_6 = arith.constant 0 : i32
    %12 = tpu.memref_slice %arg5[%c0_i32_5, %c0_i32_6] : memref<32x128xf32, #tpu.memory_space<any>> -> memref<8x128xf32, #tpu.memory_space<any>>
    %c0_i32_7 = arith.constant 0 : i32
    %c0_i32_8 = arith.constant 0 : i32
    %13 = tpu.memref_slice %arg11[%0, %c0_i32_7, %c0_i32_8] : memref<2x8x128xf32, #tpu.memory_space<vmem>> -> memref<1x8x128xf32, #tpu.memory_space<vmem>>
    %14 = tpu.memref_squeeze %13 : memref<1x8x128xf32, #tpu.memory_space<vmem>> -> memref<8x128xf32, #tpu.memory_space<vmem>>
    %15 = tpu.memref_slice %arg12[%0] : memref<2x!tpu.dma_semaphore, #tpu.memory_space<semaphore_mem>> -> memref<1x!tpu.dma_semaphore, #tpu.memory_space<semaphore_mem>>
    %16 = tpu.memref_squeeze %15 : memref<1x!tpu.dma_semaphore, #tpu.memory_space<semaphore_mem>> -> memref<!tpu.dma_semaphore, #tpu.memory_space<semaphore_mem>>
    tpu.wait_dma2 semaphore(%16 : memref<!tpu.dma_semaphore, #tpu.memory_space<semaphore_mem>>) src(%12 : memref<8x128xf32, #tpu.memory_space<any>>) dst(%14 : memref<8x128xf32, #tpu.memory_space<vmem>>)
    %17 = arith.index_cast %0 : i32 to index
    %c0 = arith.constant 0 : index
    %c0_9 = arith.constant 0 : index
    %18 = vector.load %arg11[%17, %c0, %c0_9] : memref<2x8x128xf32, #tpu.memory_space<vmem>>, vector<1x8x128xf32>
    %19 = vector.shape_cast %18 : vector<1x8x128xf32> to vector<8x128xf32>
    %20 = arith.index_cast %11 : i32 to index
    %c0_10 = arith.constant 0 : index
    %21 = vector.load %arg6[%20, %c0_10] : memref<24x128xf32, #tpu.memory_space<vmem>>, vector<8x128xf32>
    %c0_11 = arith.constant 0 : index
    %c0_12 = arith.constant 0 : index
    %c0_13 = arith.constant 0 : index
    %22 = vector.load %arg4[%c0_11, %c0_12, %c0_13] : memref<1x8x1xi32, #tpu.memory_space<vmem>>, vector<1x8x1xi32>
    %23 = vector.shape_cast %22 : vector<1x8x1xi32> to vector<8x1xi32>
    %c0_14 = arith.constant 0 : index
    %c0_15 = arith.constant 0 : index
    %24 = vector.load %arg7[%c0_14, %c0_15] : memref<2x128xf32, #tpu.memory_space<vmem>>, vector<1x128xf32>
    %25 = vector.shape_cast %24 : vector<1x128xf32> to vector<128xf32>
    %26 = vector.shape_cast %25 : vector<128xf32> to vector<1x128xf32>
    %27 = vector.broadcast %26 : vector<1x128xf32> to vector<8x128xf32>
    %c1_i32_16 = arith.constant 1 : i32
    %28 = vector.broadcast %c1_i32_16 : i32 to vector<8x1xi32>
    %29 = arith.cmpi eq, %23, %28 : vector<8x1xi32>
    %c1 = arith.constant 1 : index
    %c0_17 = arith.constant 0 : index
    %30 = vector.load %arg7[%c1, %c0_17] : memref<2x128xf32, #tpu.memory_space<vmem>>, vector<1x128xf32>
    %31 = vector.shape_cast %30 : vector<1x128xf32> to vector<128xf32>
    %32 = vector.shape_cast %29 : vector<8x1xi1> to vector<8x1xi1>
    %33 = vector.broadcast %32 : vector<8x1xi1> to vector<8x128xi1>
    %34 = vector.shape_cast %31 : vector<128xf32> to vector<1x128xf32>
    %35 = vector.broadcast %34 : vector<1x128xf32> to vector<8x128xf32>
    %36 = arith.select %33, %35, %27 : vector<8x128xi1>, vector<8x128xf32>
    %37 = arith.addf %19, %21 : vector<8x128xf32>
    %38 = arith.addf %37, %36 : vector<8x128xf32>
    %cst = arith.constant dense<0.000000e+00> : vector<8xf32>
    %39 = vector.multi_reduction <add>, %38, %cst [1] : vector<8x128xf32> to vector<8xf32>
    %40 = vector.shape_cast %39 : vector<8xf32> to vector<8x1xf32>
    %cst_18 = arith.constant 7.812500e-03 : f32
    %41 = vector.broadcast %cst_18 : f32 to vector<8x1xf32>
    %42 = arith.mulf %40, %41 : vector<8x1xf32>
    %43 = vector.broadcast %42 : vector<8x1xf32> to vector<8x128xf32>
    %44 = arith.subf %38, %43 : vector<8x128xf32>
    %45 = arith.mulf %44, %44 : vector<8x128xf32>
    %cst_19 = arith.constant dense<0.000000e+00> : vector<8xf32>
    %46 = vector.multi_reduction <add>, %45, %cst_19 [1] : vector<8x128xf32> to vector<8xf32>
    %47 = vector.shape_cast %46 : vector<8xf32> to vector<8x1xf32>
    %cst_20 = arith.constant 7.812500e-03 : f32
    %48 = vector.broadcast %cst_20 : f32 to vector<8x1xf32>
    %49 = arith.mulf %47, %48 : vector<8x1xf32>
    %cst_21 = arith.constant 9.99999996E-13 : f32
    %50 = vector.broadcast %cst_21 : f32 to vector<8x1xf32>
    %51 = arith.addf %49, %50 : vector<8x1xf32>
    %52 = math.rsqrt %51 : vector<8x1xf32>
    %c0_22 = arith.constant 0 : index
    %c0_23 = arith.constant 0 : index
    %53 = vector.load %arg8[%c0_22, %c0_23] : memref<1x128xf32, #tpu.memory_space<vmem>>, vector<1x128xf32>
    %c0_24 = arith.constant 0 : index
    %c0_25 = arith.constant 0 : index
    %54 = vector.load %arg9[%c0_24, %c0_25] : memref<1x128xf32, #tpu.memory_space<vmem>>, vector<1x128xf32>
    %55 = vector.broadcast %52 : vector<8x1xf32> to vector<8x128xf32>
    %56 = vector.broadcast %53 : vector<1x128xf32> to vector<8x128xf32>
    %57 = arith.mulf %55, %56 : vector<8x128xf32>
    %58 = arith.mulf %44, %57 : vector<8x128xf32>
    %59 = vector.broadcast %54 : vector<1x128xf32> to vector<8x128xf32>
    %60 = arith.addf %58, %59 : vector<8x128xf32>
    %c0_26 = arith.constant 0 : index
    %c0_27 = arith.constant 0 : index
    %c0_28 = arith.constant 0 : index
    %61 = vector.load %arg10[%c0_26, %c0_27, %c0_28] : memref<1x8x128xf32, #tpu.memory_space<vmem>>, vector<1x8x128xf32>
    %62 = vector.shape_cast %61 : vector<1x8x128xf32> to vector<8x128xf32>
    %63 = vector.shape_cast %60 : vector<8x128xf32> to vector<1x8x128xf32>
    tpu.vector_store %arg10[%c0_26, %c0_27, %c0_28], %63 {strides = array<i32>} : memref<1x8x128xf32, #tpu.memory_space<vmem>>, vector<1x8x128xf32>,
    return
  }
  func.func @transform_0(%arg0: i32, %arg1: i32, %arg2: memref<16xi32, #tpu.memory_space<smem>>, %arg3: memref<2xi32, #tpu.memory_space<smem>>) -> (i32, i32, i32) {
    %c0_i32 = arith.constant 0 : i32
    %c0_i32_0 = arith.constant 0 : i32
    return %arg0, %arg1, %c0_i32 : i32, i32, i32
  }
  func.func @transform_2(%arg0: i32, %arg1: i32, %arg2: memref<16xi32, #tpu.memory_space<smem>>, %arg3: memref<2xi32, #tpu.memory_space<smem>>) -> (i32, i32) {
    %c0_i32 = arith.constant 0 : i32
    %c0_i32_0 = arith.constant 0 : i32
    %c0_i32_1 = arith.constant 0 : i32
    return %c0_i32, %c0_i32_0 : i32, i32
  }
  func.func @transform_3(%arg0: i32, %arg1: i32, %arg2: memref<16xi32, #tpu.memory_space<smem>>, %arg3: memref<2xi32, #tpu.memory_space<smem>>) -> (i32, i32) {
    %c0_i32 = arith.constant 0 : i32
    %c0_i32_0 = arith.constant 0 : i32
    %c0_i32_1 = arith.constant 0 : i32
    return %c0_i32, %c0_i32_0 : i32, i32
  }
  func.func @transform_4(%arg0: i32, %arg1: i32, %arg2: memref<16xi32, #tpu.memory_space<smem>>, %arg3: memref<2xi32, #tpu.memory_space<smem>>) -> (i32, i32) {
    %c0_i32 = arith.constant 0 : i32
    %c0_i32_0 = arith.constant 0 : i32
    %c0_i32_1 = arith.constant 0 : i32
    return %c0_i32, %c0_i32_0 : i32, i32
  }
  func.func @transform_5(%arg0: i32, %arg1: i32, %arg2: memref<16xi32, #tpu.memory_space<smem>>, %arg3: memref<2xi32, #tpu.memory_space<smem>>) -> (i32, i32) {
    %c0_i32 = arith.constant 0 : i32
    %c0_i32_0 = arith.constant 0 : i32
    %c0_i32_1 = arith.constant 0 : i32
    return %c0_i32, %c0_i32_0 : i32, i32
  }
  func.func @transform_6(%arg0: i32, %arg1: i32, %arg2: memref<16xi32, #tpu.memory_space<smem>>, %arg3: memref<2xi32, #tpu.memory_space<smem>>) -> (i32, i32, i32) {
    %c0_i32 = arith.constant 0 : i32
    %c0_i32_0 = arith.constant 0 : i32
    return %arg0, %arg1, %c0_i32 : i32, i32, i32
  }
}

</mosaic_0001>

<llo_original>
// kernel: tpu_custom_call.1
$region0: #{tpu_custom_call.1}
  #allocation0 [shape = 'u32[]', space=smem, size = 0x4, offset = 0x4, fixed_abs, tag = 'smem constant byte address 0x4 - core index']
  #allocation1 [shape = 'u32[144,128]{1,0:T(1,128)}', space=vmem, size = 0x12000, scoped, tag = 'internal scratch']
  #allocation2 [shape = 'f32[2,8,128]{2,1,0:T(8,128)}', space=vmem, size = 0x2000, scoped, tag = 'scratch operand']
  #allocation3 [shape = 's32[2]{0}', space=sflag, size = 0x8, scoped, tag = 'scratch operand']
  #allocation4 [shape = 's32[1]{0}', space=sflag, size = 0x4, scoped, tag = 'scoped memory for tpu_custom_call.1']
  #allocation5 [shape = 'u8[512]{0}', space=smem, size = 0x200, scoped, tag = 'prefetched SMEM operand 0']
  #allocation6 [shape = 'u8[512]{0}', space=smem, size = 0x200, scoped, tag = 'prefetched SMEM operand 1']
  #allocation9 [shape = 's32[]', space=sflag, size = 0x4, offset = 0, fixed_abs, tag = 'sflag constant byte address 0x0 - dummy sync flag']
  #allocation10 [shape = 's32[]', space=sflag, size = 0x4, offset = 0, fixed_abs, tag = 'sflag constant byte address 0x0 - dummy sync flag']
  #allocation11 [shape = 'u32[]', space=smem, size = 0x4, offset = 0x44, fixed_abs, tag = 'smem constant byte address 0x44 - assertion arg 0']
  #allocation12 [shape = 'u32[]', space=smem, size = 0x4, offset = 0x48, fixed_abs, tag = 'smem constant byte address 0x48 - assertion arg 1']
  #allocation13 [shape = 's32[]', space=sflag, size = 0x4, offset = 0, fixed_abs, tag = 'sflag constant byte address 0x0 - dummy sync flag']
  #allocation14 [shape = 's32[]', space=sflag, size = 0x4, offset = 0, fixed_abs, tag = 'sflag constant byte address 0x0 - dummy sync flag']
  #allocation15 [shape = 's32[]', space=sflag, size = 0x4, offset = 0, fixed_abs, tag = 'sflag constant byte address 0x0 - dummy sync flag']
  #allocation16 [shape = 's32[]', space=sflag, size = 0x4, offset = 0, fixed_abs, tag = 'sflag constant byte address 0x0 - dummy sync flag']
  #allocation17 [shape = 's32[]', space=sflag, size = 0x4, offset = 0, fixed_abs, tag = 'sflag constant byte address 0x0 - dummy sync flag']
  #allocation18 [shape = 's32[]', space=sflag, size = 0x4, offset = 0, fixed_abs, tag = 'sflag constant byte address 0x0 - dummy sync flag']
  #allocation19 [shape = 's32[]', space=sflag, size = 0x4, offset = 0, fixed_abs, tag = 'sflag constant byte address 0x0 - dummy sync flag']
  #allocation20 [shape = 's32[]', space=sflag, size = 0x4, offset = 0, fixed_abs, tag = 'sflag constant byte address 0x0 - dummy sync flag']
  #allocation21 [shape = 's32[]', space=sflag, size = 0x4, offset = 0, fixed_abs, tag = 'sflag constant byte address 0x0 - dummy sync flag']
  #allocation22 [shape = 's32[]', space=sflag, size = 0x4, offset = 0, fixed_abs, tag = 'sflag constant byte address 0x0 - dummy sync flag']
  #allocation23 [shape = 's32[]', space=sflag, size = 0x4, offset = 0, fixed_abs, tag = 'sflag constant byte address 0x0 - dummy sync flag']
  #allocation24 [shape = 's32[]', space=sflag, size = 0x4, offset = 0, fixed_abs, tag = 'sflag constant byte address 0x0 - dummy sync flag']
  #allocation25 [shape = 's32[]', space=sflag, size = 0x4, offset = 0, fixed_abs, tag = 'sflag constant byte address 0x0 - dummy sync flag']
  #allocation26 [shape = 's32[]', space=sflag, size = 0x4, offset = 0, fixed_abs, tag = 'sflag constant byte address 0x0 - dummy sync flag']
  #allocation27 [shape = 's32[]', space=sflag, size = 0x4, offset = 0, fixed_abs, tag = 'sflag constant byte address 0x0 - dummy sync flag']
  #allocation28 [shape = 's32[]', space=sflag, size = 0x4, offset = 0, fixed_abs, tag = 'sflag constant byte address 0x0 - dummy sync flag']
  #allocation29 [shape = 's32[]', space=sflag, size = 0x4, offset = 0, fixed_abs, tag = 'sflag constant byte address 0x0 - dummy sync flag']
  #allocation30 [shape = 's32[]', space=sflag, size = 0x4, offset = 0, fixed_abs, tag = 'sflag constant byte address 0x0 - dummy sync flag']
  #allocation31 [shape = 's32[]', space=sflag, size = 0x4, offset = 0, fixed_abs, tag = 'sflag constant byte address 0x0 - dummy sync flag']
  #allocation32 [shape = 's32[]', space=sflag, size = 0x4, offset = 0, fixed_abs, tag = 'sflag constant byte address 0x0 - dummy sync flag']
  #allocation33 [shape = 's32[]', space=sflag, size = 0x4, offset = 0, fixed_abs, tag = 'sflag constant byte address 0x0 - dummy sync flag']
  #allocation34 [shape = 's32[]', space=sflag, size = 0x4, offset = 0, fixed_abs, tag = 'sflag constant byte address 0x0 - dummy sync flag']
  #allocation35 [shape = 's32[]', space=sflag, size = 0x4, offset = 0, fixed_abs, tag = 'sflag constant byte address 0x0 - dummy sync flag']
  #allocation36 [shape = 's32[]', space=sflag, size = 0x4, offset = 0, fixed_abs, tag = 'sflag constant byte address 0x0 - dummy sync flag']
  #allocation37 [shape = 's32[]', space=sflag, size = 0x4, offset = 0, fixed_abs, tag = 'sflag constant byte address 0x0 - dummy sync flag']
  #allocation38 [shape = 's32[]', space=sflag, size = 0x4, offset = 0, fixed_abs, tag = 'sflag constant byte address 0x0 - dummy sync flag']
  #allocation39 [shape = 's32[]', space=sflag, size = 0x4, offset = 0, fixed_abs, tag = 'sflag constant byte address 0x0 - dummy sync flag']
  #allocation40 [shape = 's32[]', space=sflag, size = 0x4, offset = 0, fixed_abs, tag = 'sflag constant byte address 0x0 - dummy sync flag']
  #allocation41 [shape = 's32[]', space=sflag, size = 0x4, offset = 0, fixed_abs, tag = 'sflag constant byte address 0x0 - dummy sync flag']
  #allocation42 [shape = 's32[]', space=sflag, size = 0x4, offset = 0, fixed_abs, tag = 'sflag constant byte address 0x0 - dummy sync flag']
  %s0 = inlined_call_operand.vmem [shape: s32[16], index: 0, kind: input, shape index: {}]
  %s1 = inlined_call_operand.vmem [shape: s32[2], index: 1, kind: input, shape index: {}]
  %s2 = inlined_call_operand.vmem [shape: s32[2,8,1], index: 2, kind: input, shape index: {}]
  %s3 = inlined_call_operand.hbm [shape: f32[32,128], index: 3, kind: input, shape index: {}]
  %s4 = inlined_call_operand.vmem [shape: f32[24,128], index: 4, kind: input, shape index: {}]
  %s5 = inlined_call_operand.vmem [shape: f32[2,128], index: 5, kind: input, shape index: {}]
  %s6 = inlined_call_operand.vmem [shape: f32[1,128], index: 6, kind: input, shape index: {}]
  %s7 = inlined_call_operand.vmem [shape: f32[1,128], index: 7, kind: input, shape index: {}]
  %s8 = inlined_call_operand.hbm [shape: f32[2,8,128], index: 8, kind: output, shape index: {}]
  %s9 = sld [smem:[#allocation0]]
  $region125: #{tpu_custom_call.1} parent=0
    _
  %s11 = ssub.s32 1, %s9
  %s12 = scalar_select 0, %s11, %s9
  %s13 = sshll.u32 %s0, 4
  %s14 = int_to_ptr.vmem [resolvable:$true] %s13
  %16 = dma.vmem_to_smem %s14, 16, [#allocation5], [#allocation4]
  %s17 = sshll.u32 %s1, 4
  %s18 = int_to_ptr.vmem [resolvable:$true] %s17
  %20 = dma.vmem_to_smem %s18, 16, [#allocation6], [#allocation4]
  %21 = dma.done [#allocation4], 32
  %22 = sfence
  $region1: #{tpu_custom_call.1} parent=0
    #allocation7 [shape = 'u8[8192]{0}', space=vmem, size = 0x2000, scoped, tag = 'output window, operand 0']
    #allocation8 [shape = 's32[2]{0}', space=sflag, size = 0x8, scoped, tag = 'scoped memory for tpu_custom_call.1']
    %23 = vsyncpa [#allocation8], 0
    %s24 = scalar_lea.sflag [#allocation8], 1
    %25 = vsyncpa %s24, 0
    loop: start=0, step=1, limit=4
    $region2: #{tpu_custom_call.1} parent=1 // loop_pre_header
      _
    $region3: #{tpu_custom_call.1} parent=1 // loop_header
      %s27 = sphi 0, %s31
      %p28 = scmp.ge.s32.totalorder %s27, 4
      %s34 = sphi 0, %s46
      %s35 = sphi 0, %s42
      %s36 = sphi 0, %s34
      %s37 = sphi 0, %s35
      %s38 = sphi 0, %s36
      %s39 = sphi 0, %s37
      %s51 = sphi 0, %s53
      %s54 = sphi 0, %s51
      %s55 = sphi 0, %s54
      %s71 = sphi 0, %s55
      %s75 = sphi 0, %s75
      %s77 = sphi 0, %s75
      %s78 = sphi 0, %s77
      %s92 = sphi 0, %s78
      %s96 = sphi 0, %s96
      %s98 = sphi 0, %s96
      %s99 = sphi 0, %s98
      %s113 = sphi 0, %s99
      %s117 = sphi 0, %s117
      %s119 = sphi 0, %s117
      %s120 = sphi 0, %s119
      %s134 = sphi 0, %s120
      %s138 = sphi 0, %s138
      %s140 = sphi 0, %s138
      %s141 = sphi 0, %s140
      %s155 = sphi 0, %s141
      %s163 = sphi 0, %s165
      %s166 = sphi 0, %s163
      %s167 = sphi 0, %s166
      %s183 = sphi 0, %s167
    $region4: #{tpu_custom_call.1} parent=1 // loop_header_branch
      %30 = sbr.rel (%p28) target = $region8
    $region5: #{tpu_custom_call.1} parent=1 // loop_body
      %s32 = ssub.s32 %s27, 1
      %s33 = ssub.s32 %s27, 2
      %s40 = sadd.s32 1, %s35
      %p41 = scmp.ge.s32.totalorder %s40, 1
      %s42 = scalar_select %p41, 0, %s40
      %s43 = sadd.s32 1, %s34
      %s44 = scalar_select %p41, %s43, %s34
      %p45 = scmp.ge.s32.totalorder %s44, 2
      %s46 = scalar_select %p45, 0, %s44
      %s47 = ssub.s32 %s34, %s46
      %s48 = ssub.s32 %s35, %s42
      %s49 = sor.u32 %s47, %s48
      %p50 = scmp.eq.s32.totalorder %s49, 0
      %s52 = sadd.s32 %s51, 1
      %s53 = scalar_select %p50, %s51, %s52
      %p56 = pneg %p50
      %p57 = scmp.eq.s32.totalorder %s27, 1
      %p58 = por %p56, %p57
      %p59 = scmp.ne.s32.totalorder %s51, %s54
      %p60 = scmp.eq.s32.totalorder %s27, 0
      %p61 = por %p59, %p60
      %p62 = scmp.ne.s32.totalorder %s51, %s54
      %p63 = scmp.eq.s32.totalorder %s32, 1
      %p64 = por %p62, %p63
      %p65 = scmp.ne.s32.totalorder %s54, %s55
      %p66 = scmp.eq.s32.totalorder %s32, 0
      %p67 = por %p65, %p66
      %p68 = scmp.ne.s32.totalorder %s54, %s55
      %p69 = scmp.eq.s32.totalorder %s33, 1
      %p70 = por %p68, %p69
      %p72 = scmp.ne.s32.totalorder %s55, %s71
      %p73 = scmp.eq.s32.totalorder %s33, 0
      %p74 = por %p72, %p73
      %s76 = sadd.s32 %s75, 1
      %p79 = scmp.eq.s32.totalorder %s27, 1
      %p80 = scmp.ne.s32.totalorder %s75, %s77
      %p81 = scmp.eq.s32.totalorder %s27, 0
      %p82 = por %p80, %p81
      %p83 = scmp.ne.s32.totalorder %s75, %s77
      %p84 = scmp.eq.s32.totalorder %s32, 1
      %p85 = por %p83, %p84
      %p86 = scmp.ne.s32.totalorder %s77, %s78
      %p87 = scmp.eq.s32.totalorder %s32, 0
      %p88 = por %p86, %p87
      %p89 = scmp.ne.s32.totalorder %s77, %s78
      %p90 = scmp.eq.s32.totalorder %s33, 1
      %p91 = por %p89, %p90
      %p93 = scmp.ne.s32.totalorder %s78, %s92
      %p94 = scmp.eq.s32.totalorder %s33, 0
      %p95 = por %p93, %p94
      %s97 = sadd.s32 %s96, 1
      %p100 = scmp.eq.s32.totalorder %s27, 1
      %p101 = scmp.ne.s32.totalorder %s96, %s98
      %p102 = scmp.eq.s32.totalorder %s27, 0
      %p103 = por %p101, %p102
      %p104 = scmp.ne.s32.totalorder %s96, %s98
      %p105 = scmp.eq.s32.totalorder %s32, 1
      %p106 = por %p104, %p105
      %p107 = scmp.ne.s32.totalorder %s98, %s99
      %p108 = scmp.eq.s32.totalorder %s32, 0
      %p109 = por %p107, %p108
      %p110 = scmp.ne.s32.totalorder %s98, %s99
      %p111 = scmp.eq.s32.totalorder %s33, 1
      %p112 = por %p110, %p111
      %p114 = scmp.ne.s32.totalorder %s99, %s113
      %p115 = scmp.eq.s32.totalorder %s33, 0
      %p116 = por %p114, %p115
      %s118 = sadd.s32 %s117, 1
      %p121 = scmp.eq.s32.totalorder %s27, 1
      %p122 = scmp.ne.s32.totalorder %s117, %s119
      %p123 = scmp.eq.s32.totalorder %s27, 0
      %p124 = por %p122, %p123
      %p125 = scmp.ne.s32.totalorder %s117, %s119
      %p126 = scmp.eq.s32.totalorder %s32, 1
      %p127 = por %p125, %p126
      %p128 = scmp.ne.s32.totalorder %s119, %s120
      %p129 = scmp.eq.s32.totalorder %s32, 0
      %p130 = por %p128, %p129
      %p131 = scmp.ne.s32.totalorder %s119, %s120
      %p132 = scmp.eq.s32.totalorder %s33, 1
      %p133 = por %p131, %p132
      %p135 = scmp.ne.s32.totalorder %s120, %s134
      %p136 = scmp.eq.s32.totalorder %s33, 0
      %p137 = por %p135, %p136
      %s139 = sadd.s32 %s138, 1
      %p142 = scmp.eq.s32.totalorder %s27, 1
      %p143 = scmp.ne.s32.totalorder %s138, %s140
      %p144 = scmp.eq.s32.totalorder %s27, 0
      %p145 = por %p143, %p144
      %p146 = scmp.ne.s32.totalorder %s138, %s140
      %p147 = scmp.eq.s32.totalorder %s32, 1
      %p148 = por %p146, %p147
      %p149 = scmp.ne.s32.totalorder %s140, %s141
      %p150 = scmp.eq.s32.totalorder %s32, 0
      %p151 = por %p149, %p150
      %p152 = scmp.ne.s32.totalorder %s140, %s141
      %p153 = scmp.eq.s32.totalorder %s33, 1
      %p154 = por %p152, %p153
      %p156 = scmp.ne.s32.totalorder %s141, %s155
      %p157 = scmp.eq.s32.totalorder %s33, 0
      %p158 = por %p156, %p157
      %s159 = ssub.s32 %s34, %s46
      %s160 = ssub.s32 %s35, %s42
      %s161 = sor.u32 %s159, %s160
      %p162 = scmp.eq.s32.totalorder %s161, 0
      %s164 = sadd.s32 %s163, 1
      %s165 = scalar_select %p162, %s163, %s164
      %p168 = pneg %p162
      %p169 = scmp.eq.s32.totalorder %s27, 1
      %p170 = por %p168, %p169
      %p171 = scmp.ne.s32.totalorder %s163, %s166
      %p172 = scmp.eq.s32.totalorder %s27, 0
      %p173 = por %p171, %p172
      %p174 = scmp.ne.s32.totalorder %s163, %s166
      %p175 = scmp.eq.s32.totalorder %s32, 1
      %p176 = por %p174, %p175
      %p177 = scmp.ne.s32.totalorder %s166, %s167
      %p178 = scmp.eq.s32.totalorder %s32, 0
      %p179 = por %p177, %p178
      %p180 = scmp.ne.s32.totalorder %s166, %s167
      %p181 = scmp.eq.s32.totalorder %s33, 1
      %p182 = por %p180, %p181
      %p184 = scmp.ne.s32.totalorder %s167, %s183
      %p185 = scmp.eq.s32.totalorder %s33, 0
      %p186 = por %p184, %p185
      %p187 = scmp.le.s32.totalorder 1, %s27
      %p188 = scmp.lt.s32.totalorder %s27, 3
      %p189 = pnand %p187, %p188
      %p190 = pneg %p189
      // Predicated region
      $region9: #{tpu_custom_call.1} parent=5 // pred_check
        _
      $region10: #{tpu_custom_call.1} parent=5 // pred_check_branch
        %192 = sbr.rel (%p189) target = $region12
      $region11: #{tpu_custom_call.1} parent=5 // pred_region
        %s193 = ssub.s32 %s27, 1
        // Predicated region
        $region13: #{tpu_custom_call.1} parent=11 // pred_check
          %p194 = pneg %p88
        $region14: #{tpu_custom_call.1} parent=11 // pred_check_branch
          %196 = sbr.rel (%p194) target = $region16
        $region15: #{tpu_custom_call.1} parent=11 // pred_region
          _
        $region16: #{tpu_custom_call.1} parent=11 // pred_fallthru
          _
        // Predicated region
        $region17: #{tpu_custom_call.1} parent=11 // pred_check
          %p197 = pneg %p109
        $region18: #{tpu_custom_call.1} parent=11 // pred_check_branch
          %199 = sbr.rel (%p197) target = $region20
        $region19: #{tpu_custom_call.1} parent=11 // pred_region
          _
        $region20: #{tpu_custom_call.1} parent=11 // pred_fallthru
          _
        // Predicated region
        $region21: #{tpu_custom_call.1} parent=11 // pred_check
          %p200 = pneg %p130
        $region22: #{tpu_custom_call.1} parent=11 // pred_check_branch
          %202 = sbr.rel (%p200) target = $region24
        $region23: #{tpu_custom_call.1} parent=11 // pred_region
          _
        $region24: #{tpu_custom_call.1} parent=11 // pred_fallthru
          _
        // Predicated region
        $region25: #{tpu_custom_call.1} parent=11 // pred_check
          %p203 = pneg %p151
        $region26: #{tpu_custom_call.1} parent=11 // pred_check_branch
          %205 = sbr.rel (%p203) target = $region28
        $region27: #{tpu_custom_call.1} parent=11 // pred_region
          _
        $region28: #{tpu_custom_call.1} parent=11 // pred_fallthru
          _
      $region12: #{tpu_custom_call.1} parent=5 // pred_fallthru
        _
      %p206 = scmp.lt.s32.totalorder %s27, 2
      // Predicated region
      $region29: #{tpu_custom_call.1} parent=5 // pred_check
        %p207 = pneg %p206
      $region30: #{tpu_custom_call.1} parent=5 // pred_check_branch
        %209 = sbr.rel (%p207) target = $region32
      $region31: #{tpu_custom_call.1} parent=5 // pred_region
        // Predicated region
        $region33: #{tpu_custom_call.1} parent=31 // pred_check
          %p210 = pneg %p61
        $region34: #{tpu_custom_call.1} parent=31 // pred_check_branch
          %212 = sbr.rel (%p210) target = $region36
        $region35: #{tpu_custom_call.1} parent=31 // pred_region
          %p213 = scmp.lt.s32.totalorder %s34, 1
          %s214 = scalar_select %p213, %s34, 1
          %p215 = scmp.lt.s32.totalorder %s35, 0
          %s216 = scalar_select %p215, %s35, 0
          %s217 = sadd.s32 %s216, %s214
          %s218 = smul.addr %s217, 8
          %s219 = scalar_lea.vmem %s2, %s218
        $region36: #{tpu_custom_call.1} parent=31 // pred_fallthru
          _
      $region32: #{tpu_custom_call.1} parent=5 // pred_fallthru
        _
      %p220 = scmp.le.s32.totalorder 1, %s27
      %p221 = scmp.lt.s32.totalorder %s27, 3
      %p222 = pnand %p220, %p221
      %p223 = pneg %p222
      // Predicated region
      $region37: #{tpu_custom_call.1} parent=5 // pred_check
        _
      $region38: #{tpu_custom_call.1} parent=5 // pred_check_branch
        %225 = sbr.rel (%p222) target = $region40
      $region39: #{tpu_custom_call.1} parent=5 // pred_region
        %s226 = ssub.s32 %s27, 1
        %p227 = scmp.lt.s32.totalorder %s36, 1
        %s228 = scalar_select %p227, %s36, 1
        %p229 = scmp.lt.s32.totalorder %s37, 0
        %s230 = scalar_select %p229, %s37, 0
        %s231 = sadd.s32 %s230, %s228
        %s232 = smul.addr %s231, 8
        %s233 = scalar_lea.vmem %s2, %s232
        %p234 = pneg %p67
        %p235 = pneg %p64
        %p236 = pneg %p88
        %p237 = pneg %p85
        %p238 = pneg %p109
        %p239 = pneg %p106
        %p240 = pneg %p130
        %p241 = pneg %p127
        %p242 = pneg %p151
        %p243 = pneg %p148
        %p244 = pneg %p179
        %p245 = pneg %p176
        %s246 = sand.u32 %s166, 1
        %s247 = scalar_lea.sflag [#allocation8], %s246
        %s248 = sand.u32 %s166, 1
        %s249 = smul.addr %s248, 8
        %s250 = scalar_lea.vmem [#allocation7], %s249
        %p251 = scmp.lt.s32.totalorder %s36, 1
        %s252 = scalar_select %p251, %s36, 1
        %p253 = scmp.lt.s32.totalorder %s37, 0
        %s254 = scalar_select %p253, %s37, 0
        %s255 = sadd.s32 %s254, %s252
        %s256 = smul.addr %s255, 8
        %s257 = scalar_lea.vmem %s2, %s256
        %s258 = sand.u32 %s37, 1
        %p259 = scmp.eq.s32.totalorder %s37, 0
        // Predicated region
        $region41: #{tpu_custom_call.1} parent=39 // pred_check
          %p260 = pneg %p259
        $region42: #{tpu_custom_call.1} parent=39 // pred_check_branch
          %262 = sbr.rel (%p260) target = $region44
        $region43: #{tpu_custom_call.1} parent=39 // pred_region
          %s263 = smul.u32 %s36, 8
          %s264 = sld [smem:[#allocation5 + %s263]]
          %s265 = smul.addr %s264, 16
          %s266 = scalar_lea.hbm %s3, %s265
          // Predicated region
          $region45: #{tpu_custom_call.1} parent=43 // pred_check
            _
          $region46: #{tpu_custom_call.1} parent=43 // pred_check_branch
            %268 = sbr.rel target = $region48
          $region47: #{tpu_custom_call.1} parent=43 // pred_region
            %269 = sst [smem:[#allocation11]] [#allocation10]
            %270 = sst [smem:[#allocation12]] [#allocation9]
          $region48: #{tpu_custom_call.1} parent=43 // pred_fallthru
            _
          %272 = shalt.err (0)
          %s274 = sshll.u32 [#allocation2], 4
          %s275 = int_to_ptr.vmem [resolvable:$true] %s274
          %277 = dma.hbm_to_vmem [thread:$0]  %s266, 16, %s275, [#allocation3]
          %s278 = sadd.s32 %s263, 1
          %s279 = sld [smem:[#allocation5 + %s278]]
          %s280 = smul.addr %s279, 16
          %s281 = scalar_lea.hbm %s3, %s280
          %s282 = scalar_lea.vmem [#allocation2], 1
          // Predicated region
          $region49: #{tpu_custom_call.1} parent=43 // pred_check
            _
          $region50: #{tpu_custom_call.1} parent=43 // pred_check_branch
            %284 = sbr.rel target = $region52
          $region51: #{tpu_custom_call.1} parent=43 // pred_region
            %285 = sst [smem:[#allocation11]] [#allocation14]
            %286 = sst [smem:[#allocation12]] [#allocation13]
          $region52: #{tpu_custom_call.1} parent=43 // pred_fallthru
            _
          %288 = shalt.err (0)
          %s290 = sshll.u32 %s282, 4
          %s291 = int_to_ptr.vmem [resolvable:$true] %s290
          %293 = dma.hbm_to_vmem [thread:$0]  %s281, 16, %s291, [#allocation3]
          %s294 = sadd.s32 %s263, 2
          %s295 = sld [smem:[#allocation5 + %s294]]
          %s296 = smul.addr %s295, 16
          %s297 = scalar_lea.hbm %s3, %s296
          %s298 = scalar_lea.vmem [#allocation2], 2
          // Predicated region
          $region53: #{tpu_custom_call.1} parent=43 // pred_check
            _
          $region54: #{tpu_custom_call.1} parent=43 // pred_check_branch
            %300 = sbr.rel target = $region56
          $region55: #{tpu_custom_call.1} parent=43 // pred_region
            %301 = sst [smem:[#allocation11]] [#allocation16]
            %302 = sst [smem:[#allocation12]] [#allocation15]
          $region56: #{tpu_custom_call.1} parent=43 // pred_fallthru
            _
          %304 = shalt.err (0)
          %s306 = sshll.u32 %s298, 4
          %s307 = int_to_ptr.vmem [resolvable:$true] %s306
          %309 = dma.hbm_to_vmem [thread:$0]  %s297, 16, %s307, [#allocation3]
          %s310 = sadd.s32 %s263, 3
          %s311 = sld [smem:[#allocation5 + %s310]]
          %s312 = smul.addr %s311, 16
          %s313 = scalar_lea.hbm %s3, %s312
          %s314 = scalar_lea.vmem [#allocation2], 3
          // Predicated region
          $region57: #{tpu_custom_call.1} parent=43 // pred_check
            _
          $region58: #{tpu_custom_call.1} parent=43 // pred_check_branch
            %316 = sbr.rel target = $region60
          $region59: #{tpu_custom_call.1} parent=43 // pred_region
            %317 = sst [smem:[#allocation11]] [#allocation18]
            %318 = sst [smem:[#allocation12]] [#allocation17]
          $region60: #{tpu_custom_call.1} parent=43 // pred_fallthru
            _
          %320 = shalt.err (0)
          %s322 = sshll.u32 %s314, 4
          %s323 = int_to_ptr.vmem [resolvable:$true] %s322
          %325 = dma.hbm_to_vmem [thread:$0]  %s313, 16, %s323, [#allocation3]
          %s326 = sadd.s32 %s263, 4
          %s327 = sld [smem:[#allocation5 + %s326]]
          %s328 = smul.addr %s327, 16
          %s329 = scalar_lea.hbm %s3, %s328
          %s330 = scalar_lea.vmem [#allocation2], 4
          // Predicated region
          $region61: #{tpu_custom_call.1} parent=43 // pred_check
            _
          $region62: #{tpu_custom_call.1} parent=43 // pred_check_branch
            %332 = sbr.rel target = $region64
          $region63: #{tpu_custom_call.1} parent=43 // pred_region
            %333 = sst [smem:[#allocation11]] [#allocation20]
            %334 = sst [smem:[#allocation12]] [#allocation19]
          $region64: #{tpu_custom_call.1} parent=43 // pred_fallthru
            _
          %336 = shalt.err (0)
          %s338 = sshll.u32 %s330, 4
          %s339 = int_to_ptr.vmem [resolvable:$true] %s338
          %341 = dma.hbm_to_vmem [thread:$0]  %s329, 16, %s339, [#allocation3]
          %s342 = sadd.s32 %s263, 5
          %s343 = sld [smem:[#allocation5 + %s342]]
          %s344 = smul.addr %s343, 16
          %s345 = scalar_lea.hbm %s3, %s344
          %s346 = scalar_lea.vmem [#allocation2], 5
          // Predicated region
          $region65: #{tpu_custom_call.1} parent=43 // pred_check
            _
          $region66: #{tpu_custom_call.1} parent=43 // pred_check_branch
            %348 = sbr.rel target = $region68
          $region67: #{tpu_custom_call.1} parent=43 // pred_region
            %349 = sst [smem:[#allocation11]] [#allocation22]
            %350 = sst [smem:[#allocation12]] [#allocation21]
          $region68: #{tpu_custom_call.1} parent=43 // pred_fallthru
            _
          %352 = shalt.err (0)
          %s354 = sshll.u32 %s346, 4
          %s355 = int_to_ptr.vmem [resolvable:$true] %s354
          %357 = dma.hbm_to_vmem [thread:$0]  %s345, 16, %s355, [#allocation3]
          %s358 = sadd.s32 %s263, 6
          %s359 = sld [smem:[#allocation5 + %s358]]
          %s360 = smul.addr %s359, 16
          %s361 = scalar_lea.hbm %s3, %s360
          %s362 = scalar_lea.vmem [#allocation2], 6
          // Predicated region
          $region69: #{tpu_custom_call.1} parent=43 // pred_check
            _
          $region70: #{tpu_custom_call.1} parent=43 // pred_check_branch
            %364 = sbr.rel target = $region72
          $region71: #{tpu_custom_call.1} parent=43 // pred_region
            %365 = sst [smem:[#allocation11]] [#allocation24]
            %366 = sst [smem:[#allocation12]] [#allocation23]
          $region72: #{tpu_custom_call.1} parent=43 // pred_fallthru
            _
          %368 = shalt.err (0)
          %s370 = sshll.u32 %s362, 4
          %s371 = int_to_ptr.vmem [resolvable:$true] %s370
          %373 = dma.hbm_to_vmem [thread:$0]  %s361, 16, %s371, [#allocation3]
          %s374 = sadd.s32 %s263, 7
          %s375 = sld [smem:[#allocation5 + %s374]]
          %s376 = smul.addr %s375, 16
          %s377 = scalar_lea.hbm %s3, %s376
          %s378 = scalar_lea.vmem [#allocation2], 7
          // Predicated region
          $region73: #{tpu_custom_call.1} parent=43 // pred_check
            _
          $region74: #{tpu_custom_call.1} parent=43 // pred_check_branch
            %380 = sbr.rel target = $region76
          $region75: #{tpu_custom_call.1} parent=43 // pred_region
            %381 = sst [smem:[#allocation11]] [#allocation26]
            %382 = sst [smem:[#allocation12]] [#allocation25]
          $region76: #{tpu_custom_call.1} parent=43 // pred_fallthru
            _
          %384 = shalt.err (0)
          %s386 = sshll.u32 %s378, 4
          %s387 = int_to_ptr.vmem [resolvable:$true] %s386
          %389 = dma.hbm_to_vmem [thread:$0]  %s377, 16, %s387, [#allocation3]
        $region44: #{tpu_custom_call.1} parent=39 // pred_fallthru
          _
        %s390 = sadd.s32 %s37, 1
        %p391 = scmp.lt.s32.totalorder %s390, 1
        // Predicated region
        $region77: #{tpu_custom_call.1} parent=39 // pred_check
          %p392 = pneg %p391
        $region78: #{tpu_custom_call.1} parent=39 // pred_check_branch
          %394 = sbr.rel (%p392) target = $region80
        $region79: #{tpu_custom_call.1} parent=39 // pred_region
          %p395 = scmp.lt.s32.totalorder %s390, 0
          %s396 = scalar_select %p395, %s390, 0
          %s397 = ssub.s32 1, %s258
          %s398 = smul.u32 %s36, 8
          %s399 = smul.u32 %s396, 8
          %s400 = sadd.s32 %s398, %s399
          %s401 = sld [smem:[#allocation5 + %s400]]
          %s402 = smul.addr %s401, 16
          %s403 = scalar_lea.hbm %s3, %s402
          %s404 = smul.u32 %s397, 8
          %s405 = scalar_lea.vmem [#allocation2], %s404
          %s406 = scalar_lea.sflag [#allocation3], %s397
          // Predicated region
          $region81: #{tpu_custom_call.1} parent=79 // pred_check
            _
          $region82: #{tpu_custom_call.1} parent=79 // pred_check_branch
            %408 = sbr.rel target = $region84
          $region83: #{tpu_custom_call.1} parent=79 // pred_region
            %409 = sst [smem:[#allocation11]] [#allocation28]
            %410 = sst [smem:[#allocation12]] [#allocation27]
          $region84: #{tpu_custom_call.1} parent=79 // pred_fallthru
            _
          %412 = shalt.err (0)
          %s414 = sshll.u32 %s405, 4
          %s415 = int_to_ptr.vmem [resolvable:$true] %s414
          %417 = dma.hbm_to_vmem [thread:$0]  %s403, 16, %s415, %s406
          %s418 = sadd.s32 %s400, 1
          %s419 = sld [smem:[#allocation5 + %s418]]
          %s420 = smul.addr %s419, 16
          %s421 = scalar_lea.hbm %s3, %s420
          %s422 = sadd.s32 1, %s404
          %s423 = scalar_lea.vmem [#allocation2], %s422
          // Predicated region
          $region85: #{tpu_custom_call.1} parent=79 // pred_check
            _
          $region86: #{tpu_custom_call.1} parent=79 // pred_check_branch
            %425 = sbr.rel target = $region88
          $region87: #{tpu_custom_call.1} parent=79 // pred_region
            %426 = sst [smem:[#allocation11]] [#allocation30]
            %427 = sst [smem:[#allocation12]] [#allocation29]
          $region88: #{tpu_custom_call.1} parent=79 // pred_fallthru
            _
          %429 = shalt.err (0)
          %s431 = sshll.u32 %s423, 4
          %s432 = int_to_ptr.vmem [resolvable:$true] %s431
          %434 = dma.hbm_to_vmem [thread:$0]  %s421, 16, %s432, %s406
          %s435 = sadd.s32 %s400, 2
          %s436 = sld [smem:[#allocation5 + %s435]]
          %s437 = smul.addr %s436, 16
          %s438 = scalar_lea.hbm %s3, %s437
          %s439 = sadd.s32 2, %s404
          %s440 = scalar_lea.vmem [#allocation2], %s439
          // Predicated region
          $region89: #{tpu_custom_call.1} parent=79 // pred_check
            _
          $region90: #{tpu_custom_call.1} parent=79 // pred_check_branch
            %442 = sbr.rel target = $region92
          $region91: #{tpu_custom_call.1} parent=79 // pred_region
            %443 = sst [smem:[#allocation11]] [#allocation32]
            %444 = sst [smem:[#allocation12]] [#allocation31]
          $region92: #{tpu_custom_call.1} parent=79 // pred_fallthru
            _
          %446 = shalt.err (0)
          %s448 = sshll.u32 %s440, 4
          %s449 = int_to_ptr.vmem [resolvable:$true] %s448
          %451 = dma.hbm_to_vmem [thread:$0]  %s438, 16, %s449, %s406
          %s452 = sadd.s32 %s400, 3
          %s453 = sld [smem:[#allocation5 + %s452]]
          %s454 = smul.addr %s453, 16
          %s455 = scalar_lea.hbm %s3, %s454
          %s456 = sadd.s32 3, %s404
          %s457 = scalar_lea.vmem [#allocation2], %s456
          // Predicated region
          $region93: #{tpu_custom_call.1} parent=79 // pred_check
            _
          $region94: #{tpu_custom_call.1} parent=79 // pred_check_branch
            %459 = sbr.rel target = $region96
          $region95: #{tpu_custom_call.1} parent=79 // pred_region
            %460 = sst [smem:[#allocation11]] [#allocation34]
            %461 = sst [smem:[#allocation12]] [#allocation33]
          $region96: #{tpu_custom_call.1} parent=79 // pred_fallthru
            _
          %463 = shalt.err (0)
          %s465 = sshll.u32 %s457, 4
          %s466 = int_to_ptr.vmem [resolvable:$true] %s465
          %468 = dma.hbm_to_vmem [thread:$0]  %s455, 16, %s466, %s406
          %s469 = sadd.s32 %s400, 4
          %s470 = sld [smem:[#allocation5 + %s469]]
          %s471 = smul.addr %s470, 16
          %s472 = scalar_lea.hbm %s3, %s471
          %s473 = sadd.s32 4, %s404
          %s474 = scalar_lea.vmem [#allocation2], %s473
          // Predicated region
          $region97: #{tpu_custom_call.1} parent=79 // pred_check
            _
          $region98: #{tpu_custom_call.1} parent=79 // pred_check_branch
            %476 = sbr.rel target = $region100
          $region99: #{tpu_custom_call.1} parent=79 // pred_region
            %477 = sst [smem:[#allocation11]] [#allocation36]
            %478 = sst [smem:[#allocation12]] [#allocation35]
          $region100: #{tpu_custom_call.1} parent=79 // pred_fallthru
            _
          %480 = shalt.err (0)
          %s482 = sshll.u32 %s474, 4
          %s483 = int_to_ptr.vmem [resolvable:$true] %s482
          %485 = dma.hbm_to_vmem [thread:$0]  %s472, 16, %s483, %s406
          %s486 = sadd.s32 %s400, 5
          %s487 = sld [smem:[#allocation5 + %s486]]
          %s488 = smul.addr %s487, 16
          %s489 = scalar_lea.hbm %s3, %s488
          %s490 = sadd.s32 5, %s404
          %s491 = scalar_lea.vmem [#allocation2], %s490
          // Predicated region
          $region101: #{tpu_custom_call.1} parent=79 // pred_check
            _
          $region102: #{tpu_custom_call.1} parent=79 // pred_check_branch
            %493 = sbr.rel target = $region104
          $region103: #{tpu_custom_call.1} parent=79 // pred_region
            %494 = sst [smem:[#allocation11]] [#allocation38]
            %495 = sst [smem:[#allocation12]] [#allocation37]
          $region104: #{tpu_custom_call.1} parent=79 // pred_fallthru
            _
          %497 = shalt.err (0)
          %s499 = sshll.u32 %s491, 4
          %s500 = int_to_ptr.vmem [resolvable:$true] %s499
          %502 = dma.hbm_to_vmem [thread:$0]  %s489, 16, %s500, %s406
          %s503 = sadd.s32 %s400, 6
          %s504 = sld [smem:[#allocation5 + %s503]]
          %s505 = smul.addr %s504, 16
          %s506 = scalar_lea.hbm %s3, %s505
          %s507 = sadd.s32 6, %s404
          %s508 = scalar_lea.vmem [#allocation2], %s507
          // Predicated region
          $region105: #{tpu_custom_call.1} parent=79 // pred_check
            _
          $region106: #{tpu_custom_call.1} parent=79 // pred_check_branch
            %510 = sbr.rel target = $region108
          $region107: #{tpu_custom_call.1} parent=79 // pred_region
            %511 = sst [smem:[#allocation11]] [#allocation40]
            %512 = sst [smem:[#allocation12]] [#allocation39]
          $region108: #{tpu_custom_call.1} parent=79 // pred_fallthru
            _
          %514 = shalt.err (0)
          %s516 = sshll.u32 %s508, 4
          %s517 = int_to_ptr.vmem [resolvable:$true] %s516
          %519 = dma.hbm_to_vmem [thread:$0]  %s506, 16, %s517, %s406
          %s520 = sadd.s32 %s400, 7
          %s521 = sld [smem:[#allocation5 + %s520]]
          %s522 = smul.addr %s521, 16
          %s523 = scalar_lea.hbm %s3, %s522
          %s524 = sadd.s32 7, %s404
          %s525 = scalar_lea.vmem [#allocation2], %s524
          // Predicated region
          $region109: #{tpu_custom_call.1} parent=79 // pred_check
            _
          $region110: #{tpu_custom_call.1} parent=79 // pred_check_branch
            %527 = sbr.rel target = $region112
          $region111: #{tpu_custom_call.1} parent=79 // pred_region
            %528 = sst [smem:[#allocation11]] [#allocation42]
            %529 = sst [smem:[#allocation12]] [#allocation41]
          $region112: #{tpu_custom_call.1} parent=79 // pred_fallthru
            _
          %531 = shalt.err (0)
          %s533 = sshll.u32 %s525, 4
          %s534 = int_to_ptr.vmem [resolvable:$true] %s533
          %536 = dma.hbm_to_vmem [thread:$0]  %s523, 16, %s534, %s406
        $region80: #{tpu_custom_call.1} parent=39 // pred_fallthru
          _
        %s537 = sadd.s32 %s36, %s37
        %s538 = sld [smem:[#allocation6 + %s537]]
        %s539 = smul.u32 %s258, 8
        %s540 = scalar_lea.vmem [#allocation2], %s539
        %s541 = scalar_lea.sflag [#allocation3], %s258
        %s542 = smul.u32 8, 1
        %s543 = sshll.u32 %s542, 4
        %544 = dma.done %s541, %s543
        %v545 = vld [vmem:[%s540] sm:$0xff]
        %s546 = scalar_lea.vmem %s4, %s538
        %v547 = vld [vmem:[%s546] sm:$0xff]
        %v548 = vld [vmem:[%s257] sm:$0xff]
        %v549 = vld [vmem:[%s5] sm:$0x1]
        %v550 = vlaneseq
        %v551 = vshrl.u32 %v550, 7
        %v552 = vsub.s32 0, %v551
        %v553 = vrot.slane %v549, %v552
        %vm554 = vcmp.eq.s32.totalorder %v548, 1
        %v555 = vld [vmem:[%s5 + $0x1] sm:$0x1]
        %v556 = vsel %vm554, 1, 0
        %557 = vset.pattern.permute.xlu0 0
        %558 = vperm.xlu0 %557, %v556
        %v559 = vpop.permute.xlu0 %558
        %vm560 = vcmp.eq.s32.totalorder %v559, 1
        %v561 = vlaneseq
        %v562 = vshrl.u32 %v561, 7
        %v563 = vsub.s32 0, %v562
        %v564 = vrot.slane %v555, %v563
        %v565 = vsel %vm560, %v564, %v553
        %v566 = vadd.f32 %v545, %v547
        %v567 = vadd.f32 %v566, %v565
        %568 = vadd.xlane.f32.xlu0 %v567
        %v569 = vpop.xlane.xlu0 %568
        %v570 = vmul.f32 %v569, 0.0078125
        %v571 = vsub.f32 %v567, %v570
        %v572 = vmul.f32 %v571, %v571
        %573 = vadd.xlane.f32.xlu0 %v572
        %v574 = vpop.xlane.xlu0 %573
        %v575 = vmul.f32 %v574, 0.0078125
        %v576 = vadd.f32 %v575, 1e-12
        %v577 = vrsqrt.pop %v576
        %v578 = vld [vmem:[%s6] sm:$0x1]
        %v579 = vld [vmem:[%s7] sm:$0x1]
        %v581 = vlaneseq
        %v582 = vshrl.u32 %v581, 7
        %v583 = vsub.s32 0, %v582
        %v584 = vrot.slane %v578, %v583
        %v586 = vmul.f32 %v577, %v584
        %v587 = vmul.f32 %v571, %v586
        %v589 = vlaneseq
        %v590 = vshrl.u32 %v589, 7
        %v591 = vsub.s32 0, %v590
        %v592 = vrot.slane %v579, %v591
        %v594 = vadd.f32 %v587, %v592
        %595 = vst [vmem:[%s250] sm:$0xff] %v594
        %s596 = sand.u32 %s166, 1
        %s597 = scalar_lea.sflag [#allocation8], %s596
        %s598 = sand.u32 %s166, 1
        %s599 = smul.addr %s598, 8
        %s600 = scalar_lea.vmem [#allocation7], %s599
        // Predicated region
        $region113: #{tpu_custom_call.1} parent=39 // pred_check
          %p601 = pneg %p176
        $region114: #{tpu_custom_call.1} parent=39 // pred_check_branch
          %603 = sbr.rel (%p601) target = $region116
        $region115: #{tpu_custom_call.1} parent=39 // pred_region
          %s605 = ssub.s32 128, 128
          %606 = vsyncadd %s597, %s605
          %s607 = sadd.s32 %s37, %s36
          %s608 = smul.addr %s607, 128
          %s609 = scalar_lea.hbm %s8, %s608
          %s611 = sshll.u32 %s600, 4
          %s612 = int_to_ptr.vmem [resolvable:$true] %s611
          %614 = dma.vmem_to_hbm [thread:$0]  %s612, 128, %s609, %s597
        $region116: #{tpu_custom_call.1} parent=39 // pred_fallthru
          _
      $region40: #{tpu_custom_call.1} parent=5 // pred_fallthru
        _
      %p615 = scmp.le.s32.totalorder 2, %s27
      // Predicated region
      $region117: #{tpu_custom_call.1} parent=5 // pred_check
        %p616 = pneg %p615
      $region118: #{tpu_custom_call.1} parent=5 // pred_check_branch
        %618 = sbr.rel (%p616) target = $region120
      $region119: #{tpu_custom_call.1} parent=5 // pred_region
        %s619 = ssub.s32 %s27, 2
        // Predicated region
        $region121: #{tpu_custom_call.1} parent=119 // pred_check
          %p620 = pneg %p182
        $region122: #{tpu_custom_call.1} parent=119 // pred_check_branch
          %622 = sbr.rel (%p620) target = $region124
        $region123: #{tpu_custom_call.1} parent=119 // pred_region
          %s623 = sand.u32 %s167, 1
          %s624 = scalar_lea.sflag [#allocation8], %s623
          %s625 = sand.u32 %s167, 1
          %s626 = smul.addr %s625, 8
          %s627 = scalar_lea.vmem [#allocation7], %s626
          %628 = dma.done %s624, 128
        $region124: #{tpu_custom_call.1} parent=119 // pred_fallthru
          _
      $region120: #{tpu_custom_call.1} parent=5 // pred_fallthru
        _
    $region6: #{tpu_custom_call.1} parent=1 // loop_footer
      %s31 = sadd.s32 1, %s27
    $region7: #{tpu_custom_call.1} parent=1 // loop_footer_branch
      %26 = sbr.rel target = $region3
    $region8: #{tpu_custom_call.1} parent=1 // loop_exit
      _
    %629 = vsyncpa [#allocation8], 1
    %s630 = scalar_lea.sflag [#allocation8], 1
    %631 = vsyncpa %s630, 1
  %632 = vsyncmov [#allocation3]
  %s633 = vpop.sfrf %632
  %p634 = scmp.eq.s32.totalorder %s633, 0
  %p635 = pneg %p634
  %637 = shalt.err (%p635)
  %s638 = scalar_lea.sflag [#allocation3], 1
  %639 = vsyncmov %s638
  %s640 = vpop.sfrf %639
  %p641 = scmp.eq.s32.totalorder %s640, 0
  %p642 = pneg %p641
  %644 = shalt.err (%p642)

</llo_original>
